<compile_context>
chip_gen: v5e
topology: v5e:2x2
jax: 0.10.0
libtpu: 0.0.40
codegen_flags: <defaults>
</compile_context>

<pallas_src>
import functools

import jax
import jax.numpy as jnp
from jax import lax
from jax.experimental import pallas as pl
from jax.experimental.pallas import tpu as pltpu


def same_pad_amounts(ks):
    # Mirrors SamePadConv1D.__init__ padding logic.
    pad = (ks - 1) // 2
    if (ks - 1) % 2 != 0:
        return pad, pad + 1
    return pad, pad


# ------------------------------ Pallas kernel ------------------------------ #

def multicnn_fused_kernel(ids_ref, emb_ref, w_ref, b_ref, o_ref, *,
                          bs, n_sent, seq_len, n_taps, embed_dim):
    """Whole MultiCNN forward in one kernel invocation.

    ids_ref : (n_taps * n_sent * seq_len, 1) int32 im2col token ids (-1 = pad)
    emb_ref : (V_pad, E)            f32 embedding table (rows >= V are zero)
    w_ref   : (n_taps * E, OC_pad)  f32 fused conv weights (all branches)
    b_ref   : (1, OC_pad)           f32 fused conv bias (zero-padded)
    o_ref   : (1, bs)               f32 cosine similarities (lane-dense)
    """
    nl = n_sent * seq_len
    v_pad = emb_ref.shape[0]
    oc_pad = w_ref.shape[1]

    # 1) Embedding gather for every im2col tap: ONE one-hot MXU matmul.
    #    Padding ids (-1) match no lane -> all-zero one-hot row -> zero embed
    #    row, which implements the conv's zero "same" padding for free.
    ids = ids_ref[...]                                              # (T*NL, 1)
    lane = lax.broadcasted_iota(jnp.int32, (n_taps * nl, v_pad), 1)
    onehot = (lane == ids).astype(jnp.float32)                      # (T*NL, Vp)
    x_all = jnp.dot(onehot, emb_ref[...],
                    preferred_element_type=jnp.float32,
                    precision=lax.Precision.HIGHEST)                # (T*NL, E)

    # 2) Both conv branches fused: accumulate one tap matmul per shared tap.
    #    All slices are static and sublane-aligned (nl and E are multiples
    #    of 8), so no im2col copies / lane concats are materialized.
    w_all = w_ref[...]                                              # (T*E, OCp)
    y = jnp.zeros((nl, oc_pad), jnp.float32)
    for tau in range(n_taps):
        x_t = x_all[tau * nl:(tau + 1) * nl, :]                     # (NL, E)
        w_t = w_all[tau * embed_dim:(tau + 1) * embed_dim, :]       # (E, OCp)
        y = y + jnp.dot(x_t, w_t, preferred_element_type=jnp.float32,
                        precision=lax.Precision.HIGHEST)            # (NL, OCp)

    # 3) Global max pool + bias + ReLU for ALL sentences at once (bias/ReLU
    #    hoisted out of the pool: ReLU monotone, bias position-invariant).
    #    Zero-padded OC lanes stay exactly 0, so they are harmless downstream.
    y3 = y.reshape(n_sent, seq_len, oc_pad)
    feats = jnp.maximum(jnp.max(y3, axis=1) + b_ref[...], 0.0)      # (N, OCp)

    # 4) Cosine for all bs pairs at once via one Gram matmul; iota-masked
    #    sublane reductions yield a lane-dense (1, bs) result in one store.
    gram = jnp.einsum("nc,mc->nm", feats, feats,
                      preferred_element_type=jnp.float32,
                      precision=lax.Precision.HIGHEST)              # (N, N)
    rr = lax.broadcasted_iota(jnp.int32, (n_sent, n_sent), 0)
    cc = lax.broadcasted_iota(jnp.int32, (n_sent, n_sent), 1)
    diag = jnp.sum(jnp.where(rr == cc, gram, 0.0),
                   axis=0, keepdims=True)                           # (1, N)
    cross = jnp.sum(jnp.where(rr == cc + bs, gram, 0.0),
                    axis=0, keepdims=True)                          # (1, N)
    qq = diag[:, 0:bs]                                              # |q|^2
    aa = diag[:, bs:2 * bs]                                         # |a|^2
    qa = cross[:, 0:bs]                                             # q . a
    eps2 = jnp.float32(1e-16)                # == reference max(norm_prod, 1e-8)
    o_ref[...] = qa * lax.rsqrt(jnp.maximum(qq * aa, eps2))         # (1, bs)


# ------------------------------ JAX wrapper -------------------------------- #

def multi_cnn_forward(params, question, answer):
    """Mirrors MultiCNN.forward. question/answer = (token_ids, lengths).

    Lengths are accepted but unused, exactly like the PyTorch module.
    """
    q_tok, _q_len = question
    a_tok, _a_len = answer
    bs, seq_len = q_tok.shape
    sent = jnp.concatenate([q_tok, a_tok], axis=0).astype(jnp.int32)  # (2bs, L)
    n_sent = 2 * bs

    embed_w = params["embed"]                                         # (V, E)
    vocab, e = embed_w.shape
    v_pad = ((vocab + 127) // 128) * 128                # lane-pad the one-hot K
    emb_pad = jnp.zeros((v_pad, e), jnp.float32).at[:vocab, :].set(embed_w)

    kernel_sizes = tuple(ks for (ks, _, _) in params["convs"])
    pads = tuple(same_pad_amounts(ks) for ks in kernel_sizes)
    max_pad_l = max(p[0] for p in pads)
    max_pad_r = max(p[1] for p in pads)
    n_taps = max_pad_l + max_pad_r + 1    # shared im2col window for all branches

    # --- im2col token ids for every shared tap (pure index plumbing; -1 = pad)
    sent_pad = jnp.pad(sent, ((0, 0), (max_pad_l, max_pad_r)),
                       constant_values=-1)
    ids_taps = jnp.stack([sent_pad[:, t:t + seq_len] for t in range(n_taps)],
                         axis=0)                                    # (T, N, L)
    ids_taps = ids_taps.reshape(n_taps * n_sent * seq_len, 1).astype(jnp.int32)

    # --- fuse all branches' weights into one lane-dense (T*E, OC_pad) matrix -
    oc_total = sum(w.shape[0] for (_, w, _) in params["convs"])
    oc_pad = max(128, ((oc_total + 127) // 128) * 128)
    w_fused = jnp.zeros((n_taps * e, oc_pad), jnp.float32)
    b_fused = jnp.zeros((1, oc_pad), jnp.float32)
    col = 0
    for (ks, w, b) in params["convs"]:
        pad_l, _ = same_pad_amounts(ks)
        off = max_pad_l - pad_l        # branch tap t lives at shared tap t + off
        oc = w.shape[0]
        for t in range(ks):
            tau = t + off
            # (OC, E, KS) tap t -> (E, OC) block at rows [tau*E, (tau+1)*E)
            w_fused = w_fused.at[tau * e:(tau + 1) * e,
                                 col:col + oc].set(w[:, :, t].T)
        b_fused = b_fused.at[0, col:col + oc].set(b)
        col += oc

    kern = functools.partial(
        multicnn_fused_kernel,
        bs=bs, n_sent=n_sent, seq_len=seq_len, n_taps=n_taps, embed_dim=e)

    sim = pl.pallas_call(
        kern,
        out_shape=jax.ShapeDtypeStruct((1, bs), jnp.float32),
        in_specs=[pl.BlockSpec(memory_space=pltpu.MemorySpace.VMEM)] * 4,
        out_specs=pl.BlockSpec(memory_space=pltpu.MemorySpace.VMEM),
        compiler_params=pltpu.CompilerParams(
            vmem_limit_bytes=32 * 1024 * 1024),
    )(ids_taps, emb_pad, w_fused, b_fused)
    return sim[0]                                                   # (bs,)


# --------------------------- reference (pure JAX) --------------------------- #

def reference_forward(params, question, answer):
    q_tok, _ = question
    a_tok, _ = answer
    bs = q_tok.shape[0]
    sent = jnp.concatenate([q_tok, a_tok], axis=0)
    x = params["embed"][sent]                                     # (N, L, E)
    seq = x.shape[1]
    feats = []
    for (ks, w, b) in params["convs"]:
        pad_l, pad_r = same_pad_amounts(ks)
        xp = jnp.pad(x, ((0, 0), (pad_l, pad_r), (0, 0)))
        # out[n, l, oc] = sum_{t,e} xp[n, l+t, e] * w[oc, e, t] + b[oc]
        taps = jnp.stack([xp[:, t: t + seq, :] for t in range(ks)], axis=2)
        y = jnp.einsum("nlte,oet->nlo", taps, w,
                       precision=lax.Precision.HIGHEST) + b
        y = jnp.maximum(y, 0.0)
        feats.append(jnp.max(y, axis=1))                          # (N, OC)
    out = jnp.concatenate(feats, axis=1)
    q_o, a_o = out[:bs], out[bs:]
    num = jnp.sum(q_o * a_o, axis=1)
    den = jnp.maximum(jnp.linalg.norm(q_o, axis=1) * jnp.linalg.norm(a_o, axis=1),
                      1e-8)
    return num / den


# ---------------------------------- main ------------------------------------ #

if __name__ == "__main__":
    vocab_size = 50
    embed_dim = 32
    seq_len = 8
    bs = 2
    kernel_sizes = (3, 4)
    out_channels = (32, 32)

    key = jax.random.PRNGKey(0)
    k_emb, k_q, k_a, *k_conv = jax.random.split(key, 3 + 2 * len(kernel_sizes))

    # Deterministic synthetic parameters (same shapes as the nn.Module).
    embed_w = jax.random.normal(k_emb, (vocab_size, embed_dim), jnp.float32) * 0.1
    convs = []
    for i, (ks, oc) in enumerate(zip(kernel_sizes, out_channels)):
        w = jax.random.normal(k_conv[2 * i], (oc, embed_dim, ks), jnp.float32) * 0.1
        b = jax.random.normal(k_conv[2 * i + 1], (oc,), jnp.float32) * 0.05
        convs.append((ks, w, b))
    params = {"embed": embed_w, "convs": convs}

    q_tok = jax.random.randint(k_q, (bs, seq_len), 0, vocab_size, jnp.int32)
    a_tok = jax.random.randint(k_a, (bs, seq_len), 0, vocab_size, jnp.int32)
    q_len = jnp.full((bs,), seq_len, jnp.int32)   # lengths are unused in forward
    a_len = jnp.full((bs,), seq_len, jnp.int32)

    sim = multi_cnn_forward(params, (q_tok, q_len), (a_tok, a_len))
    sim = jax.block_until_ready(sim)

    ref = reference_forward(params, (q_tok, q_len), (a_tok, a_len))
    assert sim.shape == (bs,)
    assert jnp.allclose(sim, ref, atol=1e-5, rtol=1e-5), (sim, ref)

    print("KERNEL_OK")
</pallas_src>

<mosaic_0001>
module attributes {stable_mosaic.version = 11 : i64} {
  func.func @multicnn_fused_kernel(%arg0: memref<128x1xi32, #tpu.memory_space<vmem>>, %arg1: memref<128x32xf32, #tpu.memory_space<vmem>>, %arg2: memref<128x128xf32, #tpu.memory_space<vmem>>, %arg3: memref<1x128xf32, #tpu.memory_space<vmem>>, %arg4: memref<1x2xf32, #tpu.memory_space<vmem>>) attributes {dimension_semantics = [], scalar_prefetch = 0 : i64, scratch_operands = 0 : i64, tpu.core_type = #tpu.core_type<tc>} {
    %c0 = arith.constant 0 : index
    %c0_0 = arith.constant 0 : index
    %0 = vector.load %arg0[%c0, %c0_0] : memref<128x1xi32, #tpu.memory_space<vmem>>, vector<128x1xi32>
    %1 = tpu.iota {dimensions = array<i32: 1>} : vector<128x128xi32>
    %2 = vector.broadcast %0 : vector<128x1xi32> to vector<128x128xi32>
    %3 = arith.cmpi eq, %1, %2 : vector<128x128xi32>
    %4 = arith.extui %3 : vector<128x128xi1> to vector<128x128xi32>
    %5 = arith.sitofp %4 : vector<128x128xi32> to vector<128x128xf32>
    %c0_1 = arith.constant 0 : index
    %c0_2 = arith.constant 0 : index
    %6 = vector.load %arg1[%c0_1, %c0_2] : memref<128x32xf32, #tpu.memory_space<vmem>>, vector<128x32xf32>
    %cst = arith.constant dense<0.000000e+00> : vector<128x32xf32>
    %7 = tpu.matmul %5, %6, %cst {dimension_numbers = #tpu.dot_dimension_numbers<[1], [0], [0], [1], [0, 0, 1, 1], [], []>, precision = #tpu.contract_precision<fp32>} : vector<128x128xf32>, vector<128x32xf32>, vector<128x32xf32> -> vector<128x32xf32>
    %c0_3 = arith.constant 0 : index
    %c0_4 = arith.constant 0 : index
    %8 = vector.load %arg2[%c0_3, %c0_4] : memref<128x128xf32, #tpu.memory_space<vmem>>, vector<128x128xf32>
    %cst_5 = arith.constant 0.000000e+00 : f32
    %9 = vector.broadcast %cst_5 : f32 to vector<32x128xf32>
    %10 = vector.extract_strided_slice %7 {offsets = [0, 0], sizes = [32, 32], strides = [1, 1]} : vector<128x32xf32> to vector<32x32xf32>
    %11 = vector.extract_strided_slice %8 {offsets = [0, 0], sizes = [32, 128], strides = [1, 1]} : vector<128x128xf32> to vector<32x128xf32>
    %cst_6 = arith.constant dense<0.000000e+00> : vector<32x128xf32>
    %12 = tpu.matmul %10, %11, %cst_6 {dimension_numbers = #tpu.dot_dimension_numbers<[1], [0], [0], [1], [0, 0, 1, 1], [], []>, precision = #tpu.contract_precision<fp32>} : vector<32x32xf32>, vector<32x128xf32>, vector<32x128xf32> -> vector<32x128xf32>
    %13 = arith.addf %9, %12 : vector<32x128xf32>
    %14 = vector.extract_strided_slice %7 {offsets = [32, 0], sizes = [32, 32], strides = [1, 1]} : vector<128x32xf32> to vector<32x32xf32>
    %15 = vector.extract_strided_slice %8 {offsets = [32, 0], sizes = [32, 128], strides = [1, 1]} : vector<128x128xf32> to vector<32x128xf32>
    %cst_7 = arith.constant dense<0.000000e+00> : vector<32x128xf32>
    %16 = tpu.matmul %14, %15, %cst_7 {dimension_numbers = #tpu.dot_dimension_numbers<[1], [0], [0], [1], [0, 0, 1, 1], [], []>, precision = #tpu.contract_precision<fp32>} : vector<32x32xf32>, vector<32x128xf32>, vector<32x128xf32> -> vector<32x128xf32>
    %17 = arith.addf %13, %16 : vector<32x128xf32>
    %18 = vector.extract_strided_slice %7 {offsets = [64, 0], sizes = [32, 32], strides = [1, 1]} : vector<128x32xf32> to vector<32x32xf32>
    %19 = vector.extract_strided_slice %8 {offsets = [64, 0], sizes = [32, 128], strides = [1, 1]} : vector<128x128xf32> to vector<32x128xf32>
    %cst_8 = arith.constant dense<0.000000e+00> : vector<32x128xf32>
    %20 = tpu.matmul %18, %19, %cst_8 {dimension_numbers = #tpu.dot_dimension_numbers<[1], [0], [0], [1], [0, 0, 1, 1], [], []>, precision = #tpu.contract_precision<fp32>} : vector<32x32xf32>, vector<32x128xf32>, vector<32x128xf32> -> vector<32x128xf32>
    %21 = arith.addf %17, %20 : vector<32x128xf32>
    %22 = vector.extract_strided_slice %7 {offsets = [96, 0], sizes = [32, 32], strides = [1, 1]} : vector<128x32xf32> to vector<32x32xf32>
    %23 = vector.extract_strided_slice %8 {offsets = [96, 0], sizes = [32, 128], strides = [1, 1]} : vector<128x128xf32> to vector<32x128xf32>
    %cst_9 = arith.constant dense<0.000000e+00> : vector<32x128xf32>
    %24 = tpu.matmul %22, %23, %cst_9 {dimension_numbers = #tpu.dot_dimension_numbers<[1], [0], [0], [1], [0, 0, 1, 1], [], []>, precision = #tpu.contract_precision<fp32>} : vector<32x32xf32>, vector<32x128xf32>, vector<32x128xf32> -> vector<32x128xf32>
    %25 = arith.addf %21, %24 : vector<32x128xf32>
    %26 = vector.shape_cast %25 : vector<32x128xf32> to vector<4x8x128xf32>
    %cst_10 = arith.constant dense<0xFF800000> : vector<4x128xf32>
    %27 = vector.multi_reduction <maximumf>, %26, %cst_10 [1] : vector<4x8x128xf32> to vector<4x128xf32>
    %c0_11 = arith.constant 0 : index
    %c0_12 = arith.constant 0 : index
    %28 = vector.load %arg3[%c0_11, %c0_12] : memref<1x128xf32, #tpu.memory_space<vmem>>, vector<1x128xf32>
    %29 = vector.broadcast %28 : vector<1x128xf32> to vector<4x128xf32>
    %30 = arith.addf %27, %29 : vector<4x128xf32>
    %cst_13 = arith.constant 0.000000e+00 : f32
    %31 = vector.broadcast %cst_13 : f32 to vector<4x128xf32>
    %32 = arith.maximumf %30, %31 : vector<4x128xf32>
    "tpu.trace_start"() <{level = 10 : i32, message = "nc,mc->nm"}> : () -> ()
    %cst_14 = arith.constant dense<0.000000e+00> : vector<4x4xf32>
    %33 = tpu.matmul %32, %32, %cst_14 {dimension_numbers = #tpu.dot_dimension_numbers<[1], [1], [0], [0], [0, 0, 1, 0], [], []>, precision = #tpu.contract_precision<fp32>} : vector<4x128xf32>, vector<4x128xf32>, vector<4x4xf32> -> vector<4x4xf32>
    "tpu.trace_stop"() : () -> ()
    %34 = tpu.iota {dimensions = array<i32: 0>} : vector<4x4xi32>
    %35 = tpu.iota {dimensions = array<i32: 1>} : vector<4x4xi32>
    %36 = arith.cmpi eq, %34, %35 : vector<4x4xi32>
    %cst_15 = arith.constant 0.000000e+00 : f32
    %37 = vector.broadcast %cst_15 : f32 to vector<4x4xf32>
    %38 = arith.select %36, %33, %37 : vector<4x4xi1>, vector<4x4xf32>
    %cst_16 = arith.constant dense<0.000000e+00> : vector<4xf32>
    %39 = vector.multi_reduction <add>, %38, %cst_16 [0] : vector<4x4xf32> to vector<4xf32>
    %40 = vector.shape_cast %39 : vector<4xf32> to vector<1x4xf32>
    %c2_i32 = arith.constant 2 : i32
    %41 = vector.broadcast %c2_i32 : i32 to vector<4x4xi32>
    %42 = arith.addi %35, %41 : vector<4x4xi32>
    %43 = arith.cmpi eq, %34, %42 : vector<4x4xi32>
    %cst_17 = arith.constant 0.000000e+00 : f32
    %44 = vector.broadcast %cst_17 : f32 to vector<4x4xf32>
    %45 = arith.select %43, %33, %44 : vector<4x4xi1>, vector<4x4xf32>
    %cst_18 = arith.constant dense<0.000000e+00> : vector<4xf32>
    %46 = vector.multi_reduction <add>, %45, %cst_18 [0] : vector<4x4xf32> to vector<4xf32>
    %47 = vector.shape_cast %46 : vector<4xf32> to vector<1x4xf32>
    %48 = vector.extract_strided_slice %40 {offsets = [0, 0], sizes = [1, 2], strides = [1, 1]} : vector<1x4xf32> to vector<1x2xf32>
    %49 = vector.extract_strided_slice %40 {offsets = [0, 2], sizes = [1, 2], strides = [1, 1]} : vector<1x4xf32> to vector<1x2xf32>
    %50 = vector.extract_strided_slice %47 {offsets = [0, 0], sizes = [1, 2], strides = [1, 1]} : vector<1x4xf32> to vector<1x2xf32>
    %51 = arith.mulf %48, %49 : vector<1x2xf32>
    %cst_19 = arith.constant 1.000000e-16 : f32
    %52 = vector.broadcast %cst_19 : f32 to vector<1x2xf32>
    %53 = arith.maximumf %51, %52 : vector<1x2xf32>
    %54 = math.rsqrt %53 : vector<1x2xf32>
    %55 = arith.mulf %50, %54 : vector<1x2xf32>
    %c0_20 = arith.constant 0 : index
    %c0_21 = arith.constant 0 : index
    %56 = vector.load %arg4[%c0_20, %c0_21] : memref<1x2xf32, #tpu.memory_space<vmem>>, vector<1x2xf32>
    tpu.vector_store %arg4[%c0_20, %c0_21], %55 {strides = array<i32>} : memref<1x2xf32, #tpu.memory_space<vmem>>, vector<1x2xf32>,
    return
  }
}

</mosaic_0001>

<llo_original>
// kernel: tpu_custom_call.1
$region0: #{tpu_custom_call.1}
  #allocation0 [shape = 'u32[]', space=smem, size = 0x4, offset = 0x4, fixed_abs, tag = 'smem constant byte address 0x4 - core index']
  #allocation1 [shape = 'u32[72,128]{1,0:T(1,128)}', space=vmem, size = 0x9000, scoped, tag = 'internal scratch']
  %s0 = inlined_call_operand.vmem [shape: s32[128,1], index: 0, kind: input, shape index: {}]
  %s1 = inlined_call_operand.vmem [shape: f32[128,32], index: 1, kind: input, shape index: {}]
  %s2 = inlined_call_operand.vmem [shape: f32[128,128], index: 2, kind: input, shape index: {}]
  %s3 = inlined_call_operand.vmem [shape: f32[1,128], index: 3, kind: input, shape index: {}]
  %s4 = inlined_call_operand.hbm [shape: f32[1,2], index: 4, kind: output, shape index: {}]
  %s5 = sld [smem:[#allocation0]]
  $region26: #{tpu_custom_call.1} parent=0
    _
  %s7 = ssub.s32 1, %s5
  %s8 = scalar_select 0, %s7, %s5
  $region1: #{tpu_custom_call.1} parent=0
    #allocation2 [shape = 'u8[512]{0}', space=vmem, size = 0x400, scoped, tag = 'output window, operand 0, single buffered']
    #allocation3 [shape = 's32[1]{0}', space=sflag, size = 0x4, scoped, tag = 'scoped memory for tpu_custom_call.1']
    %9 = vsyncpa [#allocation3], 0
    // Predicated region
    $region2: #{tpu_custom_call.1} parent=1 // pred_check
      _
    $region3: #{tpu_custom_call.1} parent=1 // pred_check_branch
      %11 = sbr.rel (0) target = $region5
    $region4: #{tpu_custom_call.1} parent=1 // pred_region
      _
    $region5: #{tpu_custom_call.1} parent=1 // pred_fallthru
      _
    // Predicated region
    $region6: #{tpu_custom_call.1} parent=1 // pred_check
      _
    $region7: #{tpu_custom_call.1} parent=1 // pred_check_branch
      %13 = sbr.rel (0) target = $region9
    $region8: #{tpu_custom_call.1} parent=1 // pred_region
      _
    $region9: #{tpu_custom_call.1} parent=1 // pred_fallthru
      _
    // Predicated region
    $region10: #{tpu_custom_call.1} parent=1 // pred_check
      _
    $region11: #{tpu_custom_call.1} parent=1 // pred_check_branch
      %15 = sbr.rel (0) target = $region13
    $region12: #{tpu_custom_call.1} parent=1 // pred_region
      _
    $region13: #{tpu_custom_call.1} parent=1 // pred_fallthru
      _
    // Predicated region
    $region14: #{tpu_custom_call.1} parent=1 // pred_check
      _
    $region15: #{tpu_custom_call.1} parent=1 // pred_check_branch
      %17 = sbr.rel (0) target = $region17
    $region16: #{tpu_custom_call.1} parent=1 // pred_region
      _
    $region17: #{tpu_custom_call.1} parent=1 // pred_fallthru
      _
    %v18 = vld [vmem:[%s0] sm:$0xff]
    %v19 = vld [vmem:[%s0 + $0x8] sm:$0xff]
    %v20 = vld [vmem:[%s0 + $0x10] sm:$0xff]
    %v21 = vld [vmem:[%s0 + $0x18] sm:$0xff]
    %v22 = vld [vmem:[%s0 + $0x20] sm:$0xff]
    %v23 = vld [vmem:[%s0 + $0x28] sm:$0xff]
    %v24 = vld [vmem:[%s0 + $0x30] sm:$0xff]
    %v25 = vld [vmem:[%s0 + $0x38] sm:$0xff]
    %v26 = vld [vmem:[%s0 + $0x40] sm:$0xff]
    %v27 = vld [vmem:[%s0 + $0x48] sm:$0xff]
    %v28 = vld [vmem:[%s0 + $0x50] sm:$0xff]
    %v29 = vld [vmem:[%s0 + $0x58] sm:$0xff]
    %v30 = vld [vmem:[%s0 + $0x60] sm:$0xff]
    %v31 = vld [vmem:[%s0 + $0x68] sm:$0xff]
    %v32 = vld [vmem:[%s0 + $0x70] sm:$0xff]
    %v33 = vld [vmem:[%s0 + $0x78] sm:$0xff]
    %v34 = vlaneseq
    %v35 = vand.u32 %v34, 127
    %36 = vset.pattern.permute.xlu0 0
    %37 = vperm.xlu0 %36, %v18
    %v38 = vpop.permute.xlu0 %37
    %39 = vset.pattern.permute.xlu0 0
    %40 = vperm.xlu0 %39, %v19
    %v41 = vpop.permute.xlu0 %40
    %42 = vset.pattern.permute.xlu0 0
    %43 = vperm.xlu0 %42, %v20
    %v44 = vpop.permute.xlu0 %43
    %45 = vset.pattern.permute.xlu0 0
    %46 = vperm.xlu0 %45, %v21
    %v47 = vpop.permute.xlu0 %46
    %48 = vset.pattern.permute.xlu0 0
    %49 = vperm.xlu0 %48, %v22
    %v50 = vpop.permute.xlu0 %49
    %51 = vset.pattern.permute.xlu0 0
    %52 = vperm.xlu0 %51, %v23
    %v53 = vpop.permute.xlu0 %52
    %54 = vset.pattern.permute.xlu0 0
    %55 = vperm.xlu0 %54, %v24
    %v56 = vpop.permute.xlu0 %55
    %57 = vset.pattern.permute.xlu0 0
    %58 = vperm.xlu0 %57, %v25
    %v59 = vpop.permute.xlu0 %58
    %60 = vset.pattern.permute.xlu0 0
    %61 = vperm.xlu0 %60, %v26
    %v62 = vpop.permute.xlu0 %61
    %63 = vset.pattern.permute.xlu0 0
    %64 = vperm.xlu0 %63, %v27
    %v65 = vpop.permute.xlu0 %64
    %66 = vset.pattern.permute.xlu0 0
    %67 = vperm.xlu0 %66, %v28
    %v68 = vpop.permute.xlu0 %67
    %69 = vset.pattern.permute.xlu0 0
    %70 = vperm.xlu0 %69, %v29
    %v71 = vpop.permute.xlu0 %70
    %72 = vset.pattern.permute.xlu0 0
    %73 = vperm.xlu0 %72, %v30
    %v74 = vpop.permute.xlu0 %73
    %75 = vset.pattern.permute.xlu0 0
    %76 = vperm.xlu0 %75, %v31
    %v77 = vpop.permute.xlu0 %76
    %78 = vset.pattern.permute.xlu0 0
    %79 = vperm.xlu0 %78, %v32
    %v80 = vpop.permute.xlu0 %79
    %81 = vset.pattern.permute.xlu0 0
    %82 = vperm.xlu0 %81, %v33
    %v83 = vpop.permute.xlu0 %82
    %vm84 = vcmp.eq.s32.totalorder %v35, %v38
    %vm85 = vcmp.eq.s32.totalorder %v35, %v41
    %vm86 = vcmp.eq.s32.totalorder %v35, %v44
    %vm87 = vcmp.eq.s32.totalorder %v35, %v47
    %vm88 = vcmp.eq.s32.totalorder %v35, %v50
    %vm89 = vcmp.eq.s32.totalorder %v35, %v53
    %vm90 = vcmp.eq.s32.totalorder %v35, %v56
    %vm91 = vcmp.eq.s32.totalorder %v35, %v59
    %vm92 = vcmp.eq.s32.totalorder %v35, %v62
    %vm93 = vcmp.eq.s32.totalorder %v35, %v65
    %vm94 = vcmp.eq.s32.totalorder %v35, %v68
    %vm95 = vcmp.eq.s32.totalorder %v35, %v71
    %vm96 = vcmp.eq.s32.totalorder %v35, %v74
    %vm97 = vcmp.eq.s32.totalorder %v35, %v77
    %vm98 = vcmp.eq.s32.totalorder %v35, %v80
    %vm99 = vcmp.eq.s32.totalorder %v35, %v83
    %v100 = vsel %vm84, 1, 0
    %v101 = vsel %vm85, 1, 0
    %v102 = vsel %vm86, 1, 0
    %v103 = vsel %vm87, 1, 0
    %v104 = vsel %vm88, 1, 0
    %v105 = vsel %vm89, 1, 0
    %v106 = vsel %vm90, 1, 0
    %v107 = vsel %vm91, 1, 0
    %v108 = vsel %vm92, 1, 0
    %v109 = vsel %vm93, 1, 0
    %v110 = vsel %vm94, 1, 0
    %v111 = vsel %vm95, 1, 0
    %v112 = vsel %vm96, 1, 0
    %v113 = vsel %vm97, 1, 0
    %v114 = vsel %vm98, 1, 0
    %v115 = vsel %vm99, 1, 0
    %v116 = vcvt.s32.f32 %v100
    %v117 = vcvt.s32.f32 %v101
    %v118 = vcvt.s32.f32 %v102
    %v119 = vcvt.s32.f32 %v103
    %v120 = vcvt.s32.f32 %v104
    %v121 = vcvt.s32.f32 %v105
    %v122 = vcvt.s32.f32 %v106
    %v123 = vcvt.s32.f32 %v107
    %v124 = vcvt.s32.f32 %v108
    %v125 = vcvt.s32.f32 %v109
    %v126 = vcvt.s32.f32 %v110
    %v127 = vcvt.s32.f32 %v111
    %v128 = vcvt.s32.f32 %v112
    %v129 = vcvt.s32.f32 %v113
    %v130 = vcvt.s32.f32 %v114
    %v131 = vcvt.s32.f32 %v115
    %v132 = vld [vmem:[%s1] sm:$0xff]
    %v133 = vld [vmem:[%s1 + $0x8] sm:$0xff]
    %v134 = vld [vmem:[%s1 + $0x10] sm:$0xff]
    %v135 = vld [vmem:[%s1 + $0x18] sm:$0xff]
    %v136 = vld [vmem:[%s1 + $0x20] sm:$0xff]
    %v137 = vld [vmem:[%s1 + $0x28] sm:$0xff]
    %v138 = vld [vmem:[%s1 + $0x30] sm:$0xff]
    %v139 = vld [vmem:[%s1 + $0x38] sm:$0xff]
    %v140 = vld [vmem:[%s1 + $0x40] sm:$0xff]
    %v141 = vld [vmem:[%s1 + $0x48] sm:$0xff]
    %v142 = vld [vmem:[%s1 + $0x50] sm:$0xff]
    %v143 = vld [vmem:[%s1 + $0x58] sm:$0xff]
    %v144 = vld [vmem:[%s1 + $0x60] sm:$0xff]
    %v145 = vld [vmem:[%s1 + $0x68] sm:$0xff]
    %v146 = vld [vmem:[%s1 + $0x70] sm:$0xff]
    %v147 = vld [vmem:[%s1 + $0x78] sm:$0xff]
    %v148 = vand.u32 %v147, 4294901760
    %149 = vmatpush.msra.mxu0 %v148
    %v150 = vand.u32 %v146, 4294901760
    %151 = vmatpush.msra.mxu0 %v150
    %v152 = vand.u32 %v145, 4294901760
    %153 = vmatpush.msra.mxu0 %v152
    %v154 = vand.u32 %v144, 4294901760
    %155 = vmatpush.msra.mxu0 %v154
    %v156 = vand.u32 %v143, 4294901760
    %157 = vmatpush.msra.mxu0 %v156
    %v158 = vand.u32 %v142, 4294901760
    %159 = vmatpush.msra.mxu0 %v158
    %v160 = vand.u32 %v141, 4294901760
    %161 = vmatpush.msra.mxu0 %v160
    %v162 = vand.u32 %v140, 4294901760
    %163 = vmatpush.msra.mxu0 %v162
    %v164 = vand.u32 %v139, 4294901760
    %165 = vmatpush.msra.mxu0 %v164
    %v166 = vand.u32 %v138, 4294901760
    %167 = vmatpush.msra.mxu0 %v166
    %v168 = vand.u32 %v137, 4294901760
    %169 = vmatpush.msra.mxu0 %v168
    %v170 = vand.u32 %v136, 4294901760
    %171 = vmatpush.msra.mxu0 %v170
    %v172 = vand.u32 %v135, 4294901760
    %173 = vmatpush.msra.mxu0 %v172
    %v174 = vand.u32 %v134, 4294901760
    %175 = vmatpush.msra.mxu0 %v174
    %v176 = vand.u32 %v133, 4294901760
    %177 = vmatpush.msra.mxu0 %v176
    %v178 = vand.u32 %v132, 4294901760
    %179 = vmatpush.msra.mxu0 %v178
    %v180 = vand.u32 %v116, 4294901760
    %v181 = vsub.f32 %v116, %v180
    %v182 = vand.u32 %v181, 4294901760
    %v183 = vsub.f32 %v181, %v182
    %v184 = vand.u32 %v183, 4294901760
    %185 = vmatmul.f32.gmra.mxu0 %v184
    %v186 = vpop.f32.mrf.mxu0
    %v187 = vadd.f32 0.0, %v186
    %v188 = vand.u32 %v117, 4294901760
    %v189 = vsub.f32 %v117, %v188
    %v190 = vand.u32 %v189, 4294901760
    %v191 = vsub.f32 %v189, %v190
    %v192 = vand.u32 %v191, 4294901760
    %193 = vmatmul.f32.gmra.mxu0 %v192
    %v194 = vpop.f32.mrf.mxu0
    %v195 = vadd.f32 0.0, %v194
    %v196 = vand.u32 %v118, 4294901760
    %v197 = vsub.f32 %v118, %v196
    %v198 = vand.u32 %v197, 4294901760
    %v199 = vsub.f32 %v197, %v198
    %v200 = vand.u32 %v199, 4294901760
    %201 = vmatmul.f32.gmra.mxu0 %v200
    %v202 = vpop.f32.mrf.mxu0
    %v203 = vadd.f32 0.0, %v202
    %v204 = vand.u32 %v119, 4294901760
    %v205 = vsub.f32 %v119, %v204
    %v206 = vand.u32 %v205, 4294901760
    %v207 = vsub.f32 %v205, %v206
    %v208 = vand.u32 %v207, 4294901760
    %209 = vmatmul.f32.gmra.mxu0 %v208
    %v210 = vpop.f32.mrf.mxu0
    %v211 = vadd.f32 0.0, %v210
    %v212 = vand.u32 %v120, 4294901760
    %v213 = vsub.f32 %v120, %v212
    %v214 = vand.u32 %v213, 4294901760
    %v215 = vsub.f32 %v213, %v214
    %v216 = vand.u32 %v215, 4294901760
    %217 = vmatmul.f32.gmra.mxu0 %v216
    %v218 = vpop.f32.mrf.mxu0
    %v219 = vadd.f32 0.0, %v218
    %v220 = vand.u32 %v121, 4294901760
    %v221 = vsub.f32 %v121, %v220
    %v222 = vand.u32 %v221, 4294901760
    %v223 = vsub.f32 %v221, %v222
    %v224 = vand.u32 %v223, 4294901760
    %225 = vmatmul.f32.gmra.mxu0 %v224
    %v226 = vpop.f32.mrf.mxu0
    %v227 = vadd.f32 0.0, %v226
    %v228 = vand.u32 %v122, 4294901760
    %v229 = vsub.f32 %v122, %v228
    %v230 = vand.u32 %v229, 4294901760
    %v231 = vsub.f32 %v229, %v230
    %v232 = vand.u32 %v231, 4294901760
    %233 = vmatmul.f32.gmra.mxu0 %v232
    %v234 = vpop.f32.mrf.mxu0
    %v235 = vadd.f32 0.0, %v234
    %v236 = vand.u32 %v123, 4294901760
    %v237 = vsub.f32 %v123, %v236
    %v238 = vand.u32 %v237, 4294901760
    %v239 = vsub.f32 %v237, %v238
    %v240 = vand.u32 %v239, 4294901760
    %241 = vmatmul.f32.gmra.mxu0 %v240
    %v242 = vpop.f32.mrf.mxu0
    %v243 = vadd.f32 0.0, %v242
    %v244 = vand.u32 %v124, 4294901760
    %v245 = vsub.f32 %v124, %v244
    %v246 = vand.u32 %v245, 4294901760
    %v247 = vsub.f32 %v245, %v246
    %v248 = vand.u32 %v247, 4294901760
    %249 = vmatmul.f32.gmra.mxu0 %v248
    %v250 = vpop.f32.mrf.mxu0
    %v251 = vadd.f32 0.0, %v250
    %v252 = vand.u32 %v125, 4294901760
    %v253 = vsub.f32 %v125, %v252
    %v254 = vand.u32 %v253, 4294901760
    %v255 = vsub.f32 %v253, %v254
    %v256 = vand.u32 %v255, 4294901760
    %257 = vmatmul.f32.gmra.mxu0 %v256
    %v258 = vpop.f32.mrf.mxu0
    %v259 = vadd.f32 0.0, %v258
    %v260 = vand.u32 %v126, 4294901760
    %v261 = vsub.f32 %v126, %v260
    %v262 = vand.u32 %v261, 4294901760
    %v263 = vsub.f32 %v261, %v262
    %v264 = vand.u32 %v263, 4294901760
    %265 = vmatmul.f32.gmra.mxu0 %v264
    %v266 = vpop.f32.mrf.mxu0
    %v267 = vadd.f32 0.0, %v266
    %v268 = vand.u32 %v127, 4294901760
    %v269 = vsub.f32 %v127, %v268
    %v270 = vand.u32 %v269, 4294901760
    %v271 = vsub.f32 %v269, %v270
    %v272 = vand.u32 %v271, 4294901760
    %273 = vmatmul.f32.gmra.mxu0 %v272
    %v274 = vpop.f32.mrf.mxu0
    %v275 = vadd.f32 0.0, %v274
    %v276 = vand.u32 %v128, 4294901760
    %v277 = vsub.f32 %v128, %v276
    %v278 = vand.u32 %v277, 4294901760
    %v279 = vsub.f32 %v277, %v278
    %v280 = vand.u32 %v279, 4294901760
    %281 = vmatmul.f32.gmra.mxu0 %v280
    %v282 = vpop.f32.mrf.mxu0
    %v283 = vadd.f32 0.0, %v282
    %v284 = vand.u32 %v129, 4294901760
    %v285 = vsub.f32 %v129, %v284
    %v286 = vand.u32 %v285, 4294901760
    %v287 = vsub.f32 %v285, %v286
    %v288 = vand.u32 %v287, 4294901760
    %289 = vmatmul.f32.gmra.mxu0 %v288
    %v290 = vpop.f32.mrf.mxu0
    %v291 = vadd.f32 0.0, %v290
    %v292 = vand.u32 %v130, 4294901760
    %v293 = vsub.f32 %v130, %v292
    %v294 = vand.u32 %v293, 4294901760
    %v295 = vsub.f32 %v293, %v294
    %v296 = vand.u32 %v295, 4294901760
    %297 = vmatmul.f32.gmra.mxu0 %v296
    %v298 = vpop.f32.mrf.mxu0
    %v299 = vadd.f32 0.0, %v298
    %v300 = vand.u32 %v131, 4294901760
    %v301 = vsub.f32 %v131, %v300
    %v302 = vand.u32 %v301, 4294901760
    %v303 = vsub.f32 %v301, %v302
    %v304 = vand.u32 %v303, 4294901760
    %305 = vmatmul.f32.gmra.mxu0 %v304
    %v306 = vpop.f32.mrf.mxu0
    %v307 = vadd.f32 0.0, %v306
    %308 = vdwg.mxu0
    %v309 = vand.u32 %v147, 4294901760
    %v310 = vsub.f32 %v147, %v309
    %v311 = vand.u32 %v310, 4294901760
    %v312 = vsub.f32 %v310, %v311
    %v313 = vand.u32 %v312, 4294901760
    %314 = vmatpush.msra.mxu0 %v313
    %v315 = vand.u32 %v146, 4294901760
    %v316 = vsub.f32 %v146, %v315
    %v317 = vand.u32 %v316, 4294901760
    %v318 = vsub.f32 %v316, %v317
    %v319 = vand.u32 %v318, 4294901760
    %320 = vmatpush.msra.mxu0 %v319
    %v321 = vand.u32 %v145, 4294901760
    %v322 = vsub.f32 %v145, %v321
    %v323 = vand.u32 %v322, 4294901760
    %v324 = vsub.f32 %v322, %v323
    %v325 = vand.u32 %v324, 4294901760
    %326 = vmatpush.msra.mxu0 %v325
    %v327 = vand.u32 %v144, 4294901760
    %v328 = vsub.f32 %v144, %v327
    %v329 = vand.u32 %v328, 4294901760
    %v330 = vsub.f32 %v328, %v329
    %v331 = vand.u32 %v330, 4294901760
    %332 = vmatpush.msra.mxu0 %v331
    %v333 = vand.u32 %v143, 4294901760
    %v334 = vsub.f32 %v143, %v333
    %v335 = vand.u32 %v334, 4294901760
    %v336 = vsub.f32 %v334, %v335
    %v337 = vand.u32 %v336, 4294901760
    %338 = vmatpush.msra.mxu0 %v337
    %v339 = vand.u32 %v142, 4294901760
    %v340 = vsub.f32 %v142, %v339
    %v341 = vand.u32 %v340, 4294901760
    %v342 = vsub.f32 %v340, %v341
    %v343 = vand.u32 %v342, 4294901760
    %344 = vmatpush.msra.mxu0 %v343
    %v345 = vand.u32 %v141, 4294901760
    %v346 = vsub.f32 %v141, %v345
    %v347 = vand.u32 %v346, 4294901760
    %v348 = vsub.f32 %v346, %v347
    %v349 = vand.u32 %v348, 4294901760
    %350 = vmatpush.msra.mxu0 %v349
    %v351 = vand.u32 %v140, 4294901760
    %v352 = vsub.f32 %v140, %v351
    %v353 = vand.u32 %v352, 4294901760
    %v354 = vsub.f32 %v352, %v353
    %v355 = vand.u32 %v354, 4294901760
    %356 = vmatpush.msra.mxu0 %v355
    %v357 = vand.u32 %v139, 4294901760
    %v358 = vsub.f32 %v139, %v357
    %v359 = vand.u32 %v358, 4294901760
    %v360 = vsub.f32 %v358, %v359
    %v361 = vand.u32 %v360, 4294901760
    %362 = vmatpush.msra.mxu0 %v361
    %v363 = vand.u32 %v138, 4294901760
    %v364 = vsub.f32 %v138, %v363
    %v365 = vand.u32 %v364, 4294901760
    %v366 = vsub.f32 %v364, %v365
    %v367 = vand.u32 %v366, 4294901760
    %368 = vmatpush.msra.mxu0 %v367
    %v369 = vand.u32 %v137, 4294901760
    %v370 = vsub.f32 %v137, %v369
    %v371 = vand.u32 %v370, 4294901760
    %v372 = vsub.f32 %v370, %v371
    %v373 = vand.u32 %v372, 4294901760
    %374 = vmatpush.msra.mxu0 %v373
    %v375 = vand.u32 %v136, 4294901760
    %v376 = vsub.f32 %v136, %v375
    %v377 = vand.u32 %v376, 4294901760
    %v378 = vsub.f32 %v376, %v377
    %v379 = vand.u32 %v378, 4294901760
    %380 = vmatpush.msra.mxu0 %v379
    %v381 = vand.u32 %v135, 4294901760
    %v382 = vsub.f32 %v135, %v381
    %v383 = vand.u32 %v382, 4294901760
    %v384 = vsub.f32 %v382, %v383
    %v385 = vand.u32 %v384, 4294901760
    %386 = vmatpush.msra.mxu0 %v385
    %v387 = vand.u32 %v134, 4294901760
    %v388 = vsub.f32 %v134, %v387
    %v389 = vand.u32 %v388, 4294901760
    %v390 = vsub.f32 %v388, %v389
    %v391 = vand.u32 %v390, 4294901760
    %392 = vmatpush.msra.mxu0 %v391
    %v393 = vand.u32 %v133, 4294901760
    %v394 = vsub.f32 %v133, %v393
    %v395 = vand.u32 %v394, 4294901760
    %v396 = vsub.f32 %v394, %v395
    %v397 = vand.u32 %v396, 4294901760
    %398 = vmatpush.msra.mxu0 %v397
    %v399 = vand.u32 %v132, 4294901760
    %v400 = vsub.f32 %v132, %v399
    %v401 = vand.u32 %v400, 4294901760
    %v402 = vsub.f32 %v400, %v401
    %v403 = vand.u32 %v402, 4294901760
    %404 = vmatpush.msra.mxu0 %v403
    %v405 = vand.u32 %v116, 4294901760
    %406 = vmatmul.f32.gmra.mxu0 %v405
    %v407 = vpop.f32.mrf.mxu0
    %v408 = vadd.f32 %v187, %v407
    %v409 = vand.u32 %v117, 4294901760
    %410 = vmatmul.f32.gmra.mxu0 %v409
    %v411 = vpop.f32.mrf.mxu0
    %v412 = vadd.f32 %v195, %v411
    %v413 = vand.u32 %v118, 4294901760
    %414 = vmatmul.f32.gmra.mxu0 %v413
    %v415 = vpop.f32.mrf.mxu0
    %v416 = vadd.f32 %v203, %v415
    %v417 = vand.u32 %v119, 4294901760
    %418 = vmatmul.f32.gmra.mxu0 %v417
    %v419 = vpop.f32.mrf.mxu0
    %v420 = vadd.f32 %v211, %v419
    %v421 = vand.u32 %v120, 4294901760
    %422 = vmatmul.f32.gmra.mxu0 %v421
    %v423 = vpop.f32.mrf.mxu0
    %v424 = vadd.f32 %v219, %v423
    %v425 = vand.u32 %v121, 4294901760
    %426 = vmatmul.f32.gmra.mxu0 %v425
    %v427 = vpop.f32.mrf.mxu0
    %v428 = vadd.f32 %v227, %v427
    %v429 = vand.u32 %v122, 4294901760
    %430 = vmatmul.f32.gmra.mxu0 %v429
    %v431 = vpop.f32.mrf.mxu0
    %v432 = vadd.f32 %v235, %v431
    %v433 = vand.u32 %v123, 4294901760
    %434 = vmatmul.f32.gmra.mxu0 %v433
    %v435 = vpop.f32.mrf.mxu0
    %v436 = vadd.f32 %v243, %v435
    %v437 = vand.u32 %v124, 4294901760
    %438 = vmatmul.f32.gmra.mxu0 %v437
    %v439 = vpop.f32.mrf.mxu0
    %v440 = vadd.f32 %v251, %v439
    %v441 = vand.u32 %v125, 4294901760
    %442 = vmatmul.f32.gmra.mxu0 %v441
    %v443 = vpop.f32.mrf.mxu0
    %v444 = vadd.f32 %v259, %v443
    %v445 = vand.u32 %v126, 4294901760
    %446 = vmatmul.f32.gmra.mxu0 %v445
    %v447 = vpop.f32.mrf.mxu0
    %v448 = vadd.f32 %v267, %v447
    %v449 = vand.u32 %v127, 4294901760
    %450 = vmatmul.f32.gmra.mxu0 %v449
    %v451 = vpop.f32.mrf.mxu0
    %v452 = vadd.f32 %v275, %v451
    %v453 = vand.u32 %v128, 4294901760
    %454 = vmatmul.f32.gmra.mxu0 %v453
    %v455 = vpop.f32.mrf.mxu0
    %v456 = vadd.f32 %v283, %v455
    %v457 = vand.u32 %v129, 4294901760
    %458 = vmatmul.f32.gmra.mxu0 %v457
    %v459 = vpop.f32.mrf.mxu0
    %v460 = vadd.f32 %v291, %v459
    %v461 = vand.u32 %v130, 4294901760
    %462 = vmatmul.f32.gmra.mxu0 %v461
    %v463 = vpop.f32.mrf.mxu0
    %v464 = vadd.f32 %v299, %v463
    %v465 = vand.u32 %v131, 4294901760
    %466 = vmatmul.f32.gmra.mxu0 %v465
    %v467 = vpop.f32.mrf.mxu0
    %v468 = vadd.f32 %v307, %v467
    %469 = vdwg.mxu0
    %v470 = vand.u32 %v147, 4294901760
    %v471 = vsub.f32 %v147, %v470
    %472 = vmatpush.msra.mxu0 %v471
    %v473 = vand.u32 %v146, 4294901760
    %v474 = vsub.f32 %v146, %v473
    %475 = vmatpush.msra.mxu0 %v474
    %v476 = vand.u32 %v145, 4294901760
    %v477 = vsub.f32 %v145, %v476
    %478 = vmatpush.msra.mxu0 %v477
    %v479 = vand.u32 %v144, 4294901760
    %v480 = vsub.f32 %v144, %v479
    %481 = vmatpush.msra.mxu0 %v480
    %v482 = vand.u32 %v143, 4294901760
    %v483 = vsub.f32 %v143, %v482
    %484 = vmatpush.msra.mxu0 %v483
    %v485 = vand.u32 %v142, 4294901760
    %v486 = vsub.f32 %v142, %v485
    %487 = vmatpush.msra.mxu0 %v486
    %v488 = vand.u32 %v141, 4294901760
    %v489 = vsub.f32 %v141, %v488
    %490 = vmatpush.msra.mxu0 %v489
    %v491 = vand.u32 %v140, 4294901760
    %v492 = vsub.f32 %v140, %v491
    %493 = vmatpush.msra.mxu0 %v492
    %v494 = vand.u32 %v139, 4294901760
    %v495 = vsub.f32 %v139, %v494
    %496 = vmatpush.msra.mxu0 %v495
    %v497 = vand.u32 %v138, 4294901760
    %v498 = vsub.f32 %v138, %v497
    %499 = vmatpush.msra.mxu0 %v498
    %v500 = vand.u32 %v137, 4294901760
    %v501 = vsub.f32 %v137, %v500
    %502 = vmatpush.msra.mxu0 %v501
    %v503 = vand.u32 %v136, 4294901760
    %v504 = vsub.f32 %v136, %v503
    %505 = vmatpush.msra.mxu0 %v504
    %v506 = vand.u32 %v135, 4294901760
    %v507 = vsub.f32 %v135, %v506
    %508 = vmatpush.msra.mxu0 %v507
    %v509 = vand.u32 %v134, 4294901760
    %v510 = vsub.f32 %v134, %v509
    %511 = vmatpush.msra.mxu0 %v510
    %v512 = vand.u32 %v133, 4294901760
    %v513 = vsub.f32 %v133, %v512
    %514 = vmatpush.msra.mxu0 %v513
    %v515 = vand.u32 %v132, 4294901760
    %v516 = vsub.f32 %v132, %v515
    %517 = vmatpush.msra.mxu0 %v516
    %v518 = vand.u32 %v116, 4294901760
    %v519 = vsub.f32 %v116, %v518
    %520 = vmatmul.f32.gmra.mxu0 %v519
    %v521 = vpop.f32.mrf.mxu0
    %v522 = vadd.f32 %v408, %v521
    %v523 = vand.u32 %v117, 4294901760
    %v524 = vsub.f32 %v117, %v523
    %525 = vmatmul.f32.gmra.mxu0 %v524
    %v526 = vpop.f32.mrf.mxu0
    %v527 = vadd.f32 %v412, %v526
    %v528 = vand.u32 %v118, 4294901760
    %v529 = vsub.f32 %v118, %v528
    %530 = vmatmul.f32.gmra.mxu0 %v529
    %v531 = vpop.f32.mrf.mxu0
    %v532 = vadd.f32 %v416, %v531
    %v533 = vand.u32 %v119, 4294901760
    %v534 = vsub.f32 %v119, %v533
    %535 = vmatmul.f32.gmra.mxu0 %v534
    %v536 = vpop.f32.mrf.mxu0
    %v537 = vadd.f32 %v420, %v536
    %v538 = vand.u32 %v120, 4294901760
    %v539 = vsub.f32 %v120, %v538
    %540 = vmatmul.f32.gmra.mxu0 %v539
    %v541 = vpop.f32.mrf.mxu0
    %v542 = vadd.f32 %v424, %v541
    %v543 = vand.u32 %v121, 4294901760
    %v544 = vsub.f32 %v121, %v543
    %545 = vmatmul.f32.gmra.mxu0 %v544
    %v546 = vpop.f32.mrf.mxu0
    %v547 = vadd.f32 %v428, %v546
    %v548 = vand.u32 %v122, 4294901760
    %v549 = vsub.f32 %v122, %v548
    %550 = vmatmul.f32.gmra.mxu0 %v549
    %v551 = vpop.f32.mrf.mxu0
    %v552 = vadd.f32 %v432, %v551
    %v553 = vand.u32 %v123, 4294901760
    %v554 = vsub.f32 %v123, %v553
    %555 = vmatmul.f32.gmra.mxu0 %v554
    %v556 = vpop.f32.mrf.mxu0
    %v557 = vadd.f32 %v436, %v556
    %v558 = vand.u32 %v124, 4294901760
    %v559 = vsub.f32 %v124, %v558
    %560 = vmatmul.f32.gmra.mxu0 %v559
    %v561 = vpop.f32.mrf.mxu0
    %v562 = vadd.f32 %v440, %v561
    %v563 = vand.u32 %v125, 4294901760
    %v564 = vsub.f32 %v125, %v563
    %565 = vmatmul.f32.gmra.mxu0 %v564
    %v566 = vpop.f32.mrf.mxu0
    %v567 = vadd.f32 %v444, %v566
    %v568 = vand.u32 %v126, 4294901760
    %v569 = vsub.f32 %v126, %v568
    %570 = vmatmul.f32.gmra.mxu0 %v569
    %v571 = vpop.f32.mrf.mxu0
    %v572 = vadd.f32 %v448, %v571
    %v573 = vand.u32 %v127, 4294901760
    %v574 = vsub.f32 %v127, %v573
    %575 = vmatmul.f32.gmra.mxu0 %v574
    %v576 = vpop.f32.mrf.mxu0
    %v577 = vadd.f32 %v452, %v576
    %v578 = vand.u32 %v128, 4294901760
    %v579 = vsub.f32 %v128, %v578
    %580 = vmatmul.f32.gmra.mxu0 %v579
    %v581 = vpop.f32.mrf.mxu0
    %v582 = vadd.f32 %v456, %v581
    %v583 = vand.u32 %v129, 4294901760
    %v584 = vsub.f32 %v129, %v583
    %585 = vmatmul.f32.gmra.mxu0 %v584
    %v586 = vpop.f32.mrf.mxu0
    %v587 = vadd.f32 %v460, %v586
    %v588 = vand.u32 %v130, 4294901760
    %v589 = vsub.f32 %v130, %v588
    %590 = vmatmul.f32.gmra.mxu0 %v589
    %v591 = vpop.f32.mrf.mxu0
    %v592 = vadd.f32 %v464, %v591
    %v593 = vand.u32 %v131, 4294901760
    %v594 = vsub.f32 %v131, %v593
    %595 = vmatmul.f32.gmra.mxu0 %v594
    %v596 = vpop.f32.mrf.mxu0
    %v597 = vadd.f32 %v468, %v596
    %598 = vdwg.mxu0
    %v599 = vand.u32 %v147, 4294901760
    %600 = vmatpush.msra.mxu0 %v599
    %v601 = vand.u32 %v146, 4294901760
    %602 = vmatpush.msra.mxu0 %v601
    %v603 = vand.u32 %v145, 4294901760
    %604 = vmatpush.msra.mxu0 %v603
    %v605 = vand.u32 %v144, 4294901760
    %606 = vmatpush.msra.mxu0 %v605
    %v607 = vand.u32 %v143, 4294901760
    %608 = vmatpush.msra.mxu0 %v607
    %v609 = vand.u32 %v142, 4294901760
    %610 = vmatpush.msra.mxu0 %v609
    %v611 = vand.u32 %v141, 4294901760
    %612 = vmatpush.msra.mxu0 %v611
    %v613 = vand.u32 %v140, 4294901760
    %614 = vmatpush.msra.mxu0 %v613
    %v615 = vand.u32 %v139, 4294901760
    %616 = vmatpush.msra.mxu0 %v615
    %v617 = vand.u32 %v138, 4294901760
    %618 = vmatpush.msra.mxu0 %v617
    %v619 = vand.u32 %v137, 4294901760
    %620 = vmatpush.msra.mxu0 %v619
    %v621 = vand.u32 %v136, 4294901760
    %622 = vmatpush.msra.mxu0 %v621
    %v623 = vand.u32 %v135, 4294901760
    %624 = vmatpush.msra.mxu0 %v623
    %v625 = vand.u32 %v134, 4294901760
    %626 = vmatpush.msra.mxu0 %v625
    %v627 = vand.u32 %v133, 4294901760
    %628 = vmatpush.msra.mxu0 %v627
    %v629 = vand.u32 %v132, 4294901760
    %630 = vmatpush.msra.mxu0 %v629
    %v631 = vand.u32 %v116, 4294901760
    %v632 = vsub.f32 %v116, %v631
    %v633 = vand.u32 %v632, 4294901760
    %634 = vmatmul.f32.gmra.mxu0 %v633
    %v635 = vpop.f32.mrf.mxu0
    %v636 = vadd.f32 %v522, %v635
    %v637 = vand.u32 %v117, 4294901760
    %v638 = vsub.f32 %v117, %v637
    %v639 = vand.u32 %v638, 4294901760
    %640 = vmatmul.f32.gmra.mxu0 %v639
    %v641 = vpop.f32.mrf.mxu0
    %v642 = vadd.f32 %v527, %v641
    %v643 = vand.u32 %v118, 4294901760
    %v644 = vsub.f32 %v118, %v643
    %v645 = vand.u32 %v644, 4294901760
    %646 = vmatmul.f32.gmra.mxu0 %v645
    %v647 = vpop.f32.mrf.mxu0
    %v648 = vadd.f32 %v532, %v647
    %v649 = vand.u32 %v119, 4294901760
    %v650 = vsub.f32 %v119, %v649
    %v651 = vand.u32 %v650, 4294901760
    %652 = vmatmul.f32.gmra.mxu0 %v651
    %v653 = vpop.f32.mrf.mxu0
    %v654 = vadd.f32 %v537, %v653
    %v655 = vand.u32 %v120, 4294901760
    %v656 = vsub.f32 %v120, %v655
    %v657 = vand.u32 %v656, 4294901760
    %658 = vmatmul.f32.gmra.mxu0 %v657
    %v659 = vpop.f32.mrf.mxu0
    %v660 = vadd.f32 %v542, %v659
    %v661 = vand.u32 %v121, 4294901760
    %v662 = vsub.f32 %v121, %v661
    %v663 = vand.u32 %v662, 4294901760
    %664 = vmatmul.f32.gmra.mxu0 %v663
    %v665 = vpop.f32.mrf.mxu0
    %v666 = vadd.f32 %v547, %v665
    %v667 = vand.u32 %v122, 4294901760
    %v668 = vsub.f32 %v122, %v667
    %v669 = vand.u32 %v668, 4294901760
    %670 = vmatmul.f32.gmra.mxu0 %v669
    %v671 = vpop.f32.mrf.mxu0
    %v672 = vadd.f32 %v552, %v671
    %v673 = vand.u32 %v123, 4294901760
    %v674 = vsub.f32 %v123, %v673
    %v675 = vand.u32 %v674, 4294901760
    %676 = vmatmul.f32.gmra.mxu0 %v675
    %v677 = vpop.f32.mrf.mxu0
    %v678 = vadd.f32 %v557, %v677
    %v679 = vand.u32 %v124, 4294901760
    %v680 = vsub.f32 %v124, %v679
    %v681 = vand.u32 %v680, 4294901760
    %682 = vmatmul.f32.gmra.mxu0 %v681
    %v683 = vpop.f32.mrf.mxu0
    %v684 = vadd.f32 %v562, %v683
    %v685 = vand.u32 %v125, 4294901760
    %v686 = vsub.f32 %v125, %v685
    %v687 = vand.u32 %v686, 4294901760
    %688 = vmatmul.f32.gmra.mxu0 %v687
    %v689 = vpop.f32.mrf.mxu0
    %v690 = vadd.f32 %v567, %v689
    %v691 = vand.u32 %v126, 4294901760
    %v692 = vsub.f32 %v126, %v691
    %v693 = vand.u32 %v692, 4294901760
    %694 = vmatmul.f32.gmra.mxu0 %v693
    %v695 = vpop.f32.mrf.mxu0
    %v696 = vadd.f32 %v572, %v695
    %v697 = vand.u32 %v127, 4294901760
    %v698 = vsub.f32 %v127, %v697
    %v699 = vand.u32 %v698, 4294901760
    %700 = vmatmul.f32.gmra.mxu0 %v699
    %v701 = vpop.f32.mrf.mxu0
    %v702 = vadd.f32 %v577, %v701
    %v703 = vand.u32 %v128, 4294901760
    %v704 = vsub.f32 %v128, %v703
    %v705 = vand.u32 %v704, 4294901760
    %706 = vmatmul.f32.gmra.mxu0 %v705
    %v707 = vpop.f32.mrf.mxu0
    %v708 = vadd.f32 %v582, %v707
    %v709 = vand.u32 %v129, 4294901760
    %v710 = vsub.f32 %v129, %v709
    %v711 = vand.u32 %v710, 4294901760
    %712 = vmatmul.f32.gmra.mxu0 %v711
    %v713 = vpop.f32.mrf.mxu0
    %v714 = vadd.f32 %v587, %v713
    %v715 = vand.u32 %v130, 4294901760
    %v716 = vsub.f32 %v130, %v715
    %v717 = vand.u32 %v716, 4294901760
    %718 = vmatmul.f32.gmra.mxu0 %v717
    %v719 = vpop.f32.mrf.mxu0
    %v720 = vadd.f32 %v592, %v719
    %v721 = vand.u32 %v131, 4294901760
    %v722 = vsub.f32 %v131, %v721
    %v723 = vand.u32 %v722, 4294901760
    %724 = vmatmul.f32.gmra.mxu0 %v723
    %v725 = vpop.f32.mrf.mxu0
    %v726 = vadd.f32 %v597, %v725
    %727 = vdwg.mxu0
    %v728 = vand.u32 %v147, 4294901760
    %v729 = vsub.f32 %v147, %v728
    %v730 = vand.u32 %v729, 4294901760
    %731 = vmatpush.msra.mxu0 %v730
    %v732 = vand.u32 %v146, 4294901760
    %v733 = vsub.f32 %v146, %v732
    %v734 = vand.u32 %v733, 4294901760
    %735 = vmatpush.msra.mxu0 %v734
    %v736 = vand.u32 %v145, 4294901760
    %v737 = vsub.f32 %v145, %v736
    %v738 = vand.u32 %v737, 4294901760
    %739 = vmatpush.msra.mxu0 %v738
    %v740 = vand.u32 %v144, 4294901760
    %v741 = vsub.f32 %v144, %v740
    %v742 = vand.u32 %v741, 4294901760
    %743 = vmatpush.msra.mxu0 %v742
    %v744 = vand.u32 %v143, 4294901760
    %v745 = vsub.f32 %v143, %v744
    %v746 = vand.u32 %v745, 4294901760
    %747 = vmatpush.msra.mxu0 %v746
    %v748 = vand.u32 %v142, 4294901760
    %v749 = vsub.f32 %v142, %v748
    %v750 = vand.u32 %v749, 4294901760
    %751 = vmatpush.msra.mxu0 %v750
    %v752 = vand.u32 %v141, 4294901760
    %v753 = vsub.f32 %v141, %v752
    %v754 = vand.u32 %v753, 4294901760
    %755 = vmatpush.msra.mxu0 %v754
    %v756 = vand.u32 %v140, 4294901760
    %v757 = vsub.f32 %v140, %v756
    %v758 = vand.u32 %v757, 4294901760
    %759 = vmatpush.msra.mxu0 %v758
    %v760 = vand.u32 %v139, 4294901760
    %v761 = vsub.f32 %v139, %v760
    %v762 = vand.u32 %v761, 4294901760
    %763 = vmatpush.msra.mxu0 %v762
    %v764 = vand.u32 %v138, 4294901760
    %v765 = vsub.f32 %v138, %v764
    %v766 = vand.u32 %v765, 4294901760
    %767 = vmatpush.msra.mxu0 %v766
    %v768 = vand.u32 %v137, 4294901760
    %v769 = vsub.f32 %v137, %v768
    %v770 = vand.u32 %v769, 4294901760
    %771 = vmatpush.msra.mxu0 %v770
    %v772 = vand.u32 %v136, 4294901760
    %v773 = vsub.f32 %v136, %v772
    %v774 = vand.u32 %v773, 4294901760
    %775 = vmatpush.msra.mxu0 %v774
    %v776 = vand.u32 %v135, 4294901760
    %v777 = vsub.f32 %v135, %v776
    %v778 = vand.u32 %v777, 4294901760
    %779 = vmatpush.msra.mxu0 %v778
    %v780 = vand.u32 %v134, 4294901760
    %v781 = vsub.f32 %v134, %v780
    %v782 = vand.u32 %v781, 4294901760
    %783 = vmatpush.msra.mxu0 %v782
    %v784 = vand.u32 %v133, 4294901760
    %v785 = vsub.f32 %v133, %v784
    %v786 = vand.u32 %v785, 4294901760
    %787 = vmatpush.msra.mxu0 %v786
    %v788 = vand.u32 %v132, 4294901760
    %v789 = vsub.f32 %v132, %v788
    %v790 = vand.u32 %v789, 4294901760
    %791 = vmatpush.msra.mxu0 %v790
    %v792 = vand.u32 %v116, 4294901760
    %793 = vmatmul.f32.gmra.mxu0 %v792
    %v794 = vpop.f32.mrf.mxu0
    %v795 = vadd.f32 %v636, %v794
    %v796 = vand.u32 %v117, 4294901760
    %797 = vmatmul.f32.gmra.mxu0 %v796
    %v798 = vpop.f32.mrf.mxu0
    %v799 = vadd.f32 %v642, %v798
    %v800 = vand.u32 %v118, 4294901760
    %801 = vmatmul.f32.gmra.mxu0 %v800
    %v802 = vpop.f32.mrf.mxu0
    %v803 = vadd.f32 %v648, %v802
    %v804 = vand.u32 %v119, 4294901760
    %805 = vmatmul.f32.gmra.mxu0 %v804
    %v806 = vpop.f32.mrf.mxu0
    %v807 = vadd.f32 %v654, %v806
    %v808 = vand.u32 %v120, 4294901760
    %809 = vmatmul.f32.gmra.mxu0 %v808
    %v810 = vpop.f32.mrf.mxu0
    %v811 = vadd.f32 %v660, %v810
    %v812 = vand.u32 %v121, 4294901760
    %813 = vmatmul.f32.gmra.mxu0 %v812
    %v814 = vpop.f32.mrf.mxu0
    %v815 = vadd.f32 %v666, %v814
    %v816 = vand.u32 %v122, 4294901760
    %817 = vmatmul.f32.gmra.mxu0 %v816
    %v818 = vpop.f32.mrf.mxu0
    %v819 = vadd.f32 %v672, %v818
    %v820 = vand.u32 %v123, 4294901760
    %821 = vmatmul.f32.gmra.mxu0 %v820
    %v822 = vpop.f32.mrf.mxu0
    %v823 = vadd.f32 %v678, %v822
    %v824 = vand.u32 %v124, 4294901760
    %825 = vmatmul.f32.gmra.mxu0 %v824
    %v826 = vpop.f32.mrf.mxu0
    %v827 = vadd.f32 %v684, %v826
    %v828 = vand.u32 %v125, 4294901760
    %829 = vmatmul.f32.gmra.mxu0 %v828
    %v830 = vpop.f32.mrf.mxu0
    %v831 = vadd.f32 %v690, %v830
    %v832 = vand.u32 %v126, 4294901760
    %833 = vmatmul.f32.gmra.mxu0 %v832
    %v834 = vpop.f32.mrf.mxu0
    %v835 = vadd.f32 %v696, %v834
    %v836 = vand.u32 %v127, 4294901760
    %837 = vmatmul.f32.gmra.mxu0 %v836
    %v838 = vpop.f32.mrf.mxu0
    %v839 = vadd.f32 %v702, %v838
    %v840 = vand.u32 %v128, 4294901760
    %841 = vmatmul.f32.gmra.mxu0 %v840
    %v842 = vpop.f32.mrf.mxu0
    %v843 = vadd.f32 %v708, %v842
    %v844 = vand.u32 %v129, 4294901760
    %845 = vmatmul.f32.gmra.mxu0 %v844
    %v846 = vpop.f32.mrf.mxu0
    %v847 = vadd.f32 %v714, %v846
    %v848 = vand.u32 %v130, 4294901760
    %849 = vmatmul.f32.gmra.mxu0 %v848
    %v850 = vpop.f32.mrf.mxu0
    %v851 = vadd.f32 %v720, %v850
    %v852 = vand.u32 %v131, 4294901760
    %853 = vmatmul.f32.gmra.mxu0 %v852
    %v854 = vpop.f32.mrf.mxu0
    %v855 = vadd.f32 %v726, %v854
    %856 = vdwg.mxu0
    %v857 = vand.u32 %v147, 4294901760
    %858 = vmatpush.msra.mxu0 %v857
    %v859 = vand.u32 %v146, 4294901760
    %860 = vmatpush.msra.mxu0 %v859
    %v861 = vand.u32 %v145, 4294901760
    %862 = vmatpush.msra.mxu0 %v861
    %v863 = vand.u32 %v144, 4294901760
    %864 = vmatpush.msra.mxu0 %v863
    %v865 = vand.u32 %v143, 4294901760
    %866 = vmatpush.msra.mxu0 %v865
    %v867 = vand.u32 %v142, 4294901760
    %868 = vmatpush.msra.mxu0 %v867
    %v869 = vand.u32 %v141, 4294901760
    %870 = vmatpush.msra.mxu0 %v869
    %v871 = vand.u32 %v140, 4294901760
    %872 = vmatpush.msra.mxu0 %v871
    %v873 = vand.u32 %v139, 4294901760
    %874 = vmatpush.msra.mxu0 %v873
    %v875 = vand.u32 %v138, 4294901760
    %876 = vmatpush.msra.mxu0 %v875
    %v877 = vand.u32 %v137, 4294901760
    %878 = vmatpush.msra.mxu0 %v877
    %v879 = vand.u32 %v136, 4294901760
    %880 = vmatpush.msra.mxu0 %v879
    %v881 = vand.u32 %v135, 4294901760
    %882 = vmatpush.msra.mxu0 %v881
    %v883 = vand.u32 %v134, 4294901760
    %884 = vmatpush.msra.mxu0 %v883
    %v885 = vand.u32 %v133, 4294901760
    %886 = vmatpush.msra.mxu0 %v885
    %v887 = vand.u32 %v132, 4294901760
    %888 = vmatpush.msra.mxu0 %v887
    %v889 = vand.u32 %v116, 4294901760
    %890 = vmatmul.f32.gmra.mxu0 %v889
    %v891 = vpop.f32.mrf.mxu0
    %v892 = vadd.f32 %v795, %v891
    %v893 = vand.u32 %v117, 4294901760
    %894 = vmatmul.f32.gmra.mxu0 %v893
    %v895 = vpop.f32.mrf.mxu0
    %v896 = vadd.f32 %v799, %v895
    %v897 = vand.u32 %v118, 4294901760
    %898 = vmatmul.f32.gmra.mxu0 %v897
    %v899 = vpop.f32.mrf.mxu0
    %v900 = vadd.f32 %v803, %v899
    %v901 = vand.u32 %v119, 4294901760
    %902 = vmatmul.f32.gmra.mxu0 %v901
    %v903 = vpop.f32.mrf.mxu0
    %v904 = vadd.f32 %v807, %v903
    %v905 = vand.u32 %v120, 4294901760
    %906 = vmatmul.f32.gmra.mxu0 %v905
    %v907 = vpop.f32.mrf.mxu0
    %v908 = vadd.f32 %v811, %v907
    %v909 = vand.u32 %v121, 4294901760
    %910 = vmatmul.f32.gmra.mxu0 %v909
    %v911 = vpop.f32.mrf.mxu0
    %v912 = vadd.f32 %v815, %v911
    %v913 = vand.u32 %v122, 4294901760
    %914 = vmatmul.f32.gmra.mxu0 %v913
    %v915 = vpop.f32.mrf.mxu0
    %v916 = vadd.f32 %v819, %v915
    %v917 = vand.u32 %v123, 4294901760
    %918 = vmatmul.f32.gmra.mxu0 %v917
    %v919 = vpop.f32.mrf.mxu0
    %v920 = vadd.f32 %v823, %v919
    %v921 = vand.u32 %v124, 4294901760
    %922 = vmatmul.f32.gmra.mxu0 %v921
    %v923 = vpop.f32.mrf.mxu0
    %v924 = vadd.f32 %v827, %v923
    %v925 = vand.u32 %v125, 4294901760
    %926 = vmatmul.f32.gmra.mxu0 %v925
    %v927 = vpop.f32.mrf.mxu0
    %v928 = vadd.f32 %v831, %v927
    %v929 = vand.u32 %v126, 4294901760
    %930 = vmatmul.f32.gmra.mxu0 %v929
    %v931 = vpop.f32.mrf.mxu0
    %v932 = vadd.f32 %v835, %v931
    %v933 = vand.u32 %v127, 4294901760
    %934 = vmatmul.f32.gmra.mxu0 %v933
    %v935 = vpop.f32.mrf.mxu0
    %v936 = vadd.f32 %v839, %v935
    %v937 = vand.u32 %v128, 4294901760
    %938 = vmatmul.f32.gmra.mxu0 %v937
    %v939 = vpop.f32.mrf.mxu0
    %v940 = vadd.f32 %v843, %v939
    %v941 = vand.u32 %v129, 4294901760
    %942 = vmatmul.f32.gmra.mxu0 %v941
    %v943 = vpop.f32.mrf.mxu0
    %v944 = vadd.f32 %v847, %v943
    %v945 = vand.u32 %v130, 4294901760
    %946 = vmatmul.f32.gmra.mxu0 %v945
    %v947 = vpop.f32.mrf.mxu0
    %v948 = vadd.f32 %v851, %v947
    %v949 = vand.u32 %v131, 4294901760
    %950 = vmatmul.f32.gmra.mxu0 %v949
    %v951 = vpop.f32.mrf.mxu0
    %v952 = vadd.f32 %v855, %v951
    %953 = vdwg.mxu0
    %v954 = vld [vmem:[%s2] sm:$0xff]
    %v955 = vld [vmem:[%s2 + $0x8] sm:$0xff]
    %v956 = vld [vmem:[%s2 + $0x10] sm:$0xff]
    %v957 = vld [vmem:[%s2 + $0x18] sm:$0xff]
    %v958 = vld [vmem:[%s2 + $0x20] sm:$0xff]
    %v959 = vld [vmem:[%s2 + $0x28] sm:$0xff]
    %v960 = vld [vmem:[%s2 + $0x30] sm:$0xff]
    %v961 = vld [vmem:[%s2 + $0x38] sm:$0xff]
    %v962 = vld [vmem:[%s2 + $0x40] sm:$0xff]
    %v963 = vld [vmem:[%s2 + $0x48] sm:$0xff]
    %v964 = vld [vmem:[%s2 + $0x50] sm:$0xff]
    %v965 = vld [vmem:[%s2 + $0x58] sm:$0xff]
    %v966 = vld [vmem:[%s2 + $0x60] sm:$0xff]
    %v967 = vld [vmem:[%s2 + $0x68] sm:$0xff]
    %v968 = vld [vmem:[%s2 + $0x70] sm:$0xff]
    %v969 = vld [vmem:[%s2 + $0x78] sm:$0xff]
    %vm970 = vcmask 261120
    %v972 = vsel %vm970, %v908, 0
    %v975 = vsel %vm970, %v912, 0
    %v978 = vsel %vm970, %v916, 0
    %v981 = vsel %vm970, %v920, 0
    %983 = vmatpush.msra.mxu0 0.0
    %984 = vmatpush.msra.mxu0 0.0
    %985 = vmatpush.msra.mxu0 0.0
    %986 = vmatpush.msra.mxu0 0.0
    %987 = vmatpush.msra.mxu0 0.0
    %988 = vmatpush.msra.mxu0 0.0
    %989 = vmatpush.msra.mxu0 0.0
    %990 = vmatpush.msra.mxu0 0.0
    %991 = vmatpush.msra.mxu0 0.0
    %992 = vmatpush.msra.mxu0 0.0
    %993 = vmatpush.msra.mxu0 0.0
    %994 = vmatpush.msra.mxu0 0.0
    %v995 = vand.u32 %v961, 4294901760
    %996 = vmatpush.msra.mxu0 %v995
    %v997 = vand.u32 %v960, 4294901760
    %998 = vmatpush.msra.mxu0 %v997
    %v999 = vand.u32 %v959, 4294901760
    %1000 = vmatpush.msra.mxu0 %v999
    %v1001 = vand.u32 %v958, 4294901760
    %1002 = vmatpush.msra.mxu0 %v1001
    %v1003 = vand.u32 %v972, 4294901760
    %v1004 = vsub.f32 %v972, %v1003
    %v1005 = vand.u32 %v1004, 4294901760
    %v1006 = vsub.f32 %v1004, %v1005
    %v1007 = vand.u32 %v1006, 4294901760
    %1008 = vmatmul.f32.gmra.mxu0 %v1007
    %v1009 = vpop.f32.mrf.mxu0
    %v1010 = vadd.f32 0.0, %v1009
    %v1011 = vand.u32 %v975, 4294901760
    %v1012 = vsub.f32 %v975, %v1011
    %v1013 = vand.u32 %v1012, 4294901760
    %v1014 = vsub.f32 %v1012, %v1013
    %v1015 = vand.u32 %v1014, 4294901760
    %1016 = vmatmul.f32.gmra.mxu0 %v1015
    %v1017 = vpop.f32.mrf.mxu0
    %v1018 = vadd.f32 0.0, %v1017
    %v1019 = vand.u32 %v978, 4294901760
    %v1020 = vsub.f32 %v978, %v1019
    %v1021 = vand.u32 %v1020, 4294901760
    %v1022 = vsub.f32 %v1020, %v1021
    %v1023 = vand.u32 %v1022, 4294901760
    %1024 = vmatmul.f32.gmra.mxu0 %v1023
    %v1025 = vpop.f32.mrf.mxu0
    %v1026 = vadd.f32 0.0, %v1025
    %v1027 = vand.u32 %v981, 4294901760
    %v1028 = vsub.f32 %v981, %v1027
    %v1029 = vand.u32 %v1028, 4294901760
    %v1030 = vsub.f32 %v1028, %v1029
    %v1031 = vand.u32 %v1030, 4294901760
    %1032 = vmatmul.f32.gmra.mxu0 %v1031
    %v1033 = vpop.f32.mrf.mxu0
    %v1034 = vadd.f32 0.0, %v1033
    %1035 = vdwg.mxu0
    %1036 = vmatpush.msra.mxu0 0.0
    %1037 = vmatpush.msra.mxu0 0.0
    %1038 = vmatpush.msra.mxu0 0.0
    %1039 = vmatpush.msra.mxu0 0.0
    %1040 = vmatpush.msra.mxu0 0.0
    %1041 = vmatpush.msra.mxu0 0.0
    %1042 = vmatpush.msra.mxu0 0.0
    %1043 = vmatpush.msra.mxu0 0.0
    %1044 = vmatpush.msra.mxu0 0.0
    %1045 = vmatpush.msra.mxu0 0.0
    %1046 = vmatpush.msra.mxu0 0.0
    %1047 = vmatpush.msra.mxu0 0.0
    %v1048 = vand.u32 %v961, 4294901760
    %v1049 = vsub.f32 %v961, %v1048
    %v1050 = vand.u32 %v1049, 4294901760
    %v1051 = vsub.f32 %v1049, %v1050
    %v1052 = vand.u32 %v1051, 4294901760
    %1053 = vmatpush.msra.mxu0 %v1052
    %v1054 = vand.u32 %v960, 4294901760
    %v1055 = vsub.f32 %v960, %v1054
    %v1056 = vand.u32 %v1055, 4294901760
    %v1057 = vsub.f32 %v1055, %v1056
    %v1058 = vand.u32 %v1057, 4294901760
    %1059 = vmatpush.msra.mxu0 %v1058
    %v1060 = vand.u32 %v959, 4294901760
    %v1061 = vsub.f32 %v959, %v1060
    %v1062 = vand.u32 %v1061, 4294901760
    %v1063 = vsub.f32 %v1061, %v1062
    %v1064 = vand.u32 %v1063, 4294901760
    %1065 = vmatpush.msra.mxu0 %v1064
    %v1066 = vand.u32 %v958, 4294901760
    %v1067 = vsub.f32 %v958, %v1066
    %v1068 = vand.u32 %v1067, 4294901760
    %v1069 = vsub.f32 %v1067, %v1068
    %v1070 = vand.u32 %v1069, 4294901760
    %1071 = vmatpush.msra.mxu0 %v1070
    %v1072 = vand.u32 %v972, 4294901760
    %1073 = vmatmul.f32.gmra.mxu0 %v1072
    %v1074 = vpop.f32.mrf.mxu0
    %v1075 = vadd.f32 %v1010, %v1074
    %v1076 = vand.u32 %v975, 4294901760
    %1077 = vmatmul.f32.gmra.mxu0 %v1076
    %v1078 = vpop.f32.mrf.mxu0
    %v1079 = vadd.f32 %v1018, %v1078
    %v1080 = vand.u32 %v978, 4294901760
    %1081 = vmatmul.f32.gmra.mxu0 %v1080
    %v1082 = vpop.f32.mrf.mxu0
    %v1083 = vadd.f32 %v1026, %v1082
    %v1084 = vand.u32 %v981, 4294901760
    %1085 = vmatmul.f32.gmra.mxu0 %v1084
    %v1086 = vpop.f32.mrf.mxu0
    %v1087 = vadd.f32 %v1034, %v1086
    %1088 = vdwg.mxu0
    %1089 = vmatpush.msra.mxu0 0.0
    %1090 = vmatpush.msra.mxu0 0.0
    %1091 = vmatpush.msra.mxu0 0.0
    %1092 = vmatpush.msra.mxu0 0.0
    %1093 = vmatpush.msra.mxu0 0.0
    %1094 = vmatpush.msra.mxu0 0.0
    %1095 = vmatpush.msra.mxu0 0.0
    %1096 = vmatpush.msra.mxu0 0.0
    %1097 = vmatpush.msra.mxu0 0.0
    %1098 = vmatpush.msra.mxu0 0.0
    %1099 = vmatpush.msra.mxu0 0.0
    %1100 = vmatpush.msra.mxu0 0.0
    %v1101 = vand.u32 %v961, 4294901760
    %v1102 = vsub.f32 %v961, %v1101
    %1103 = vmatpush.msra.mxu0 %v1102
    %v1104 = vand.u32 %v960, 4294901760
    %v1105 = vsub.f32 %v960, %v1104
    %1106 = vmatpush.msra.mxu0 %v1105
    %v1107 = vand.u32 %v959, 4294901760
    %v1108 = vsub.f32 %v959, %v1107
    %1109 = vmatpush.msra.mxu0 %v1108
    %v1110 = vand.u32 %v958, 4294901760
    %v1111 = vsub.f32 %v958, %v1110
    %1112 = vmatpush.msra.mxu0 %v1111
    %v1113 = vand.u32 %v972, 4294901760
    %v1114 = vsub.f32 %v972, %v1113
    %1115 = vmatmul.f32.gmra.mxu0 %v1114
    %v1116 = vpop.f32.mrf.mxu0
    %v1117 = vadd.f32 %v1075, %v1116
    %v1118 = vand.u32 %v975, 4294901760
    %v1119 = vsub.f32 %v975, %v1118
    %1120 = vmatmul.f32.gmra.mxu0 %v1119
    %v1121 = vpop.f32.mrf.mxu0
    %v1122 = vadd.f32 %v1079, %v1121
    %v1123 = vand.u32 %v978, 4294901760
    %v1124 = vsub.f32 %v978, %v1123
    %1125 = vmatmul.f32.gmra.mxu0 %v1124
    %v1126 = vpop.f32.mrf.mxu0
    %v1127 = vadd.f32 %v1083, %v1126
    %v1128 = vand.u32 %v981, 4294901760
    %v1129 = vsub.f32 %v981, %v1128
    %1130 = vmatmul.f32.gmra.mxu0 %v1129
    %v1131 = vpop.f32.mrf.mxu0
    %v1132 = vadd.f32 %v1087, %v1131
    %1133 = vdwg.mxu0
    %1134 = vmatpush.msra.mxu0 0.0
    %1135 = vmatpush.msra.mxu0 0.0
    %1136 = vmatpush.msra.mxu0 0.0
    %1137 = vmatpush.msra.mxu0 0.0
    %1138 = vmatpush.msra.mxu0 0.0
    %1139 = vmatpush.msra.mxu0 0.0
    %1140 = vmatpush.msra.mxu0 0.0
    %1141 = vmatpush.msra.mxu0 0.0
    %1142 = vmatpush.msra.mxu0 0.0
    %1143 = vmatpush.msra.mxu0 0.0
    %1144 = vmatpush.msra.mxu0 0.0
    %1145 = vmatpush.msra.mxu0 0.0
    %v1146 = vand.u32 %v961, 4294901760
    %1147 = vmatpush.msra.mxu0 %v1146
    %v1148 = vand.u32 %v960, 4294901760
    %1149 = vmatpush.msra.mxu0 %v1148
    %v1150 = vand.u32 %v959, 4294901760
    %1151 = vmatpush.msra.mxu0 %v1150
    %v1152 = vand.u32 %v958, 4294901760
    %1153 = vmatpush.msra.mxu0 %v1152
    %v1154 = vand.u32 %v972, 4294901760
    %v1155 = vsub.f32 %v972, %v1154
    %v1156 = vand.u32 %v1155, 4294901760
    %1157 = vmatmul.f32.gmra.mxu0 %v1156
    %v1158 = vpop.f32.mrf.mxu0
    %v1159 = vadd.f32 %v1117, %v1158
    %v1160 = vand.u32 %v975, 4294901760
    %v1161 = vsub.f32 %v975, %v1160
    %v1162 = vand.u32 %v1161, 4294901760
    %1163 = vmatmul.f32.gmra.mxu0 %v1162
    %v1164 = vpop.f32.mrf.mxu0
    %v1165 = vadd.f32 %v1122, %v1164
    %v1166 = vand.u32 %v978, 4294901760
    %v1167 = vsub.f32 %v978, %v1166
    %v1168 = vand.u32 %v1167, 4294901760
    %1169 = vmatmul.f32.gmra.mxu0 %v1168
    %v1170 = vpop.f32.mrf.mxu0
    %v1171 = vadd.f32 %v1127, %v1170
    %v1172 = vand.u32 %v981, 4294901760
    %v1173 = vsub.f32 %v981, %v1172
    %v1174 = vand.u32 %v1173, 4294901760
    %1175 = vmatmul.f32.gmra.mxu0 %v1174
    %v1176 = vpop.f32.mrf.mxu0
    %v1177 = vadd.f32 %v1132, %v1176
    %1178 = vdwg.mxu0
    %1179 = vmatpush.msra.mxu0 0.0
    %1180 = vmatpush.msra.mxu0 0.0
    %1181 = vmatpush.msra.mxu0 0.0
    %1182 = vmatpush.msra.mxu0 0.0
    %1183 = vmatpush.msra.mxu0 0.0
    %1184 = vmatpush.msra.mxu0 0.0
    %1185 = vmatpush.msra.mxu0 0.0
    %1186 = vmatpush.msra.mxu0 0.0
    %1187 = vmatpush.msra.mxu0 0.0
    %1188 = vmatpush.msra.mxu0 0.0
    %1189 = vmatpush.msra.mxu0 0.0
    %1190 = vmatpush.msra.mxu0 0.0
    %v1191 = vand.u32 %v961, 4294901760
    %v1192 = vsub.f32 %v961, %v1191
    %v1193 = vand.u32 %v1192, 4294901760
    %1194 = vmatpush.msra.mxu0 %v1193
    %v1195 = vand.u32 %v960, 4294901760
    %v1196 = vsub.f32 %v960, %v1195
    %v1197 = vand.u32 %v1196, 4294901760
    %1198 = vmatpush.msra.mxu0 %v1197
    %v1199 = vand.u32 %v959, 4294901760
    %v1200 = vsub.f32 %v959, %v1199
    %v1201 = vand.u32 %v1200, 4294901760
    %1202 = vmatpush.msra.mxu0 %v1201
    %v1203 = vand.u32 %v958, 4294901760
    %v1204 = vsub.f32 %v958, %v1203
    %v1205 = vand.u32 %v1204, 4294901760
    %1206 = vmatpush.msra.mxu0 %v1205
    %v1207 = vand.u32 %v972, 4294901760
    %1208 = vmatmul.f32.gmra.mxu0 %v1207
    %v1209 = vpop.f32.mrf.mxu0
    %v1210 = vadd.f32 %v1159, %v1209
    %v1211 = vand.u32 %v975, 4294901760
    %1212 = vmatmul.f32.gmra.mxu0 %v1211
    %v1213 = vpop.f32.mrf.mxu0
    %v1214 = vadd.f32 %v1165, %v1213
    %v1215 = vand.u32 %v978, 4294901760
    %1216 = vmatmul.f32.gmra.mxu0 %v1215
    %v1217 = vpop.f32.mrf.mxu0
    %v1218 = vadd.f32 %v1171, %v1217
    %v1219 = vand.u32 %v981, 4294901760
    %1220 = vmatmul.f32.gmra.mxu0 %v1219
    %v1221 = vpop.f32.mrf.mxu0
    %v1222 = vadd.f32 %v1177, %v1221
    %1223 = vdwg.mxu0
    %1224 = vmatpush.msra.mxu0 0.0
    %1225 = vmatpush.msra.mxu0 0.0
    %1226 = vmatpush.msra.mxu0 0.0
    %1227 = vmatpush.msra.mxu0 0.0
    %1228 = vmatpush.msra.mxu0 0.0
    %1229 = vmatpush.msra.mxu0 0.0
    %1230 = vmatpush.msra.mxu0 0.0
    %1231 = vmatpush.msra.mxu0 0.0
    %1232 = vmatpush.msra.mxu0 0.0
    %1233 = vmatpush.msra.mxu0 0.0
    %1234 = vmatpush.msra.mxu0 0.0
    %1235 = vmatpush.msra.mxu0 0.0
    %v1236 = vand.u32 %v961, 4294901760
    %1237 = vmatpush.msra.mxu0 %v1236
    %v1238 = vand.u32 %v960, 4294901760
    %1239 = vmatpush.msra.mxu0 %v1238
    %v1240 = vand.u32 %v959, 4294901760
    %1241 = vmatpush.msra.mxu0 %v1240
    %v1242 = vand.u32 %v958, 4294901760
    %1243 = vmatpush.msra.mxu0 %v1242
    %v1244 = vand.u32 %v972, 4294901760
    %1245 = vmatmul.f32.gmra.mxu0 %v1244
    %v1246 = vpop.f32.mrf.mxu0
    %v1247 = vadd.f32 %v1210, %v1246
    %v1248 = vand.u32 %v975, 4294901760
    %1249 = vmatmul.f32.gmra.mxu0 %v1248
    %v1250 = vpop.f32.mrf.mxu0
    %v1251 = vadd.f32 %v1214, %v1250
    %v1252 = vand.u32 %v978, 4294901760
    %1253 = vmatmul.f32.gmra.mxu0 %v1252
    %v1254 = vpop.f32.mrf.mxu0
    %v1255 = vadd.f32 %v1218, %v1254
    %v1256 = vand.u32 %v981, 4294901760
    %1257 = vmatmul.f32.gmra.mxu0 %v1256
    %v1258 = vpop.f32.mrf.mxu0
    %v1259 = vadd.f32 %v1222, %v1258
    %1260 = vdwg.mxu0
    %v1262 = vsel %vm970, %v892, 0
    %v1265 = vsel %vm970, %v896, 0
    %v1268 = vsel %vm970, %v900, 0
    %v1271 = vsel %vm970, %v904, 0
    %1273 = vmatpush.msra.mxu0 0.0
    %1274 = vmatpush.msra.mxu0 0.0
    %1275 = vmatpush.msra.mxu0 0.0
    %1276 = vmatpush.msra.mxu0 0.0
    %1277 = vmatpush.msra.mxu0 0.0
    %1278 = vmatpush.msra.mxu0 0.0
    %1279 = vmatpush.msra.mxu0 0.0
    %1280 = vmatpush.msra.mxu0 0.0
    %1281 = vmatpush.msra.mxu0 0.0
    %1282 = vmatpush.msra.mxu0 0.0
    %1283 = vmatpush.msra.mxu0 0.0
    %1284 = vmatpush.msra.mxu0 0.0
    %v1285 = vand.u32 %v957, 4294901760
    %1286 = vmatpush.msra.mxu0 %v1285
    %v1287 = vand.u32 %v956, 4294901760
    %1288 = vmatpush.msra.mxu0 %v1287
    %v1289 = vand.u32 %v955, 4294901760
    %1290 = vmatpush.msra.mxu0 %v1289
    %v1291 = vand.u32 %v954, 4294901760
    %1292 = vmatpush.msra.mxu0 %v1291
    %v1293 = vand.u32 %v1262, 4294901760
    %v1294 = vsub.f32 %v1262, %v1293
    %v1295 = vand.u32 %v1294, 4294901760
    %v1296 = vsub.f32 %v1294, %v1295
    %v1297 = vand.u32 %v1296, 4294901760
    %1298 = vmatmul.f32.gmra.mxu0 %v1297
    %v1299 = vpop.f32.mrf.mxu0
    %v1300 = vadd.f32 %v1247, %v1299
    %v1301 = vand.u32 %v1265, 4294901760
    %v1302 = vsub.f32 %v1265, %v1301
    %v1303 = vand.u32 %v1302, 4294901760
    %v1304 = vsub.f32 %v1302, %v1303
    %v1305 = vand.u32 %v1304, 4294901760
    %1306 = vmatmul.f32.gmra.mxu0 %v1305
    %v1307 = vpop.f32.mrf.mxu0
    %v1308 = vadd.f32 %v1251, %v1307
    %v1309 = vand.u32 %v1268, 4294901760
    %v1310 = vsub.f32 %v1268, %v1309
    %v1311 = vand.u32 %v1310, 4294901760
    %v1312 = vsub.f32 %v1310, %v1311
    %v1313 = vand.u32 %v1312, 4294901760
    %1314 = vmatmul.f32.gmra.mxu0 %v1313
    %v1315 = vpop.f32.mrf.mxu0
    %v1316 = vadd.f32 %v1255, %v1315
    %v1317 = vand.u32 %v1271, 4294901760
    %v1318 = vsub.f32 %v1271, %v1317
    %v1319 = vand.u32 %v1318, 4294901760
    %v1320 = vsub.f32 %v1318, %v1319
    %v1321 = vand.u32 %v1320, 4294901760
    %1322 = vmatmul.f32.gmra.mxu0 %v1321
    %v1323 = vpop.f32.mrf.mxu0
    %v1324 = vadd.f32 %v1259, %v1323
    %1325 = vdwg.mxu0
    %1326 = vmatpush.msra.mxu0 0.0
    %1327 = vmatpush.msra.mxu0 0.0
    %1328 = vmatpush.msra.mxu0 0.0
    %1329 = vmatpush.msra.mxu0 0.0
    %1330 = vmatpush.msra.mxu0 0.0
    %1331 = vmatpush.msra.mxu0 0.0
    %1332 = vmatpush.msra.mxu0 0.0
    %1333 = vmatpush.msra.mxu0 0.0
    %1334 = vmatpush.msra.mxu0 0.0
    %1335 = vmatpush.msra.mxu0 0.0
    %1336 = vmatpush.msra.mxu0 0.0
    %1337 = vmatpush.msra.mxu0 0.0
    %v1338 = vand.u32 %v957, 4294901760
    %v1339 = vsub.f32 %v957, %v1338
    %v1340 = vand.u32 %v1339, 4294901760
    %v1341 = vsub.f32 %v1339, %v1340
    %v1342 = vand.u32 %v1341, 4294901760
    %1343 = vmatpush.msra.mxu0 %v1342
    %v1344 = vand.u32 %v956, 4294901760
    %v1345 = vsub.f32 %v956, %v1344
    %v1346 = vand.u32 %v1345, 4294901760
    %v1347 = vsub.f32 %v1345, %v1346
    %v1348 = vand.u32 %v1347, 4294901760
    %1349 = vmatpush.msra.mxu0 %v1348
    %v1350 = vand.u32 %v955, 4294901760
    %v1351 = vsub.f32 %v955, %v1350
    %v1352 = vand.u32 %v1351, 4294901760
    %v1353 = vsub.f32 %v1351, %v1352
    %v1354 = vand.u32 %v1353, 4294901760
    %1355 = vmatpush.msra.mxu0 %v1354
    %v1356 = vand.u32 %v954, 4294901760
    %v1357 = vsub.f32 %v954, %v1356
    %v1358 = vand.u32 %v1357, 4294901760
    %v1359 = vsub.f32 %v1357, %v1358
    %v1360 = vand.u32 %v1359, 4294901760
    %1361 = vmatpush.msra.mxu0 %v1360
    %v1362 = vand.u32 %v1262, 4294901760
    %1363 = vmatmul.f32.gmra.mxu0 %v1362
    %v1364 = vpop.f32.mrf.mxu0
    %v1365 = vadd.f32 %v1300, %v1364
    %v1366 = vand.u32 %v1265, 4294901760
    %1367 = vmatmul.f32.gmra.mxu0 %v1366
    %v1368 = vpop.f32.mrf.mxu0
    %v1369 = vadd.f32 %v1308, %v1368
    %v1370 = vand.u32 %v1268, 4294901760
    %1371 = vmatmul.f32.gmra.mxu0 %v1370
    %v1372 = vpop.f32.mrf.mxu0
    %v1373 = vadd.f32 %v1316, %v1372
    %v1374 = vand.u32 %v1271, 4294901760
    %1375 = vmatmul.f32.gmra.mxu0 %v1374
    %v1376 = vpop.f32.mrf.mxu0
    %v1377 = vadd.f32 %v1324, %v1376
    %1378 = vdwg.mxu0
    %1379 = vmatpush.msra.mxu0 0.0
    %1380 = vmatpush.msra.mxu0 0.0
    %1381 = vmatpush.msra.mxu0 0.0
    %1382 = vmatpush.msra.mxu0 0.0
    %1383 = vmatpush.msra.mxu0 0.0
    %1384 = vmatpush.msra.mxu0 0.0
    %1385 = vmatpush.msra.mxu0 0.0
    %1386 = vmatpush.msra.mxu0 0.0
    %1387 = vmatpush.msra.mxu0 0.0
    %1388 = vmatpush.msra.mxu0 0.0
    %1389 = vmatpush.msra.mxu0 0.0
    %1390 = vmatpush.msra.mxu0 0.0
    %v1391 = vand.u32 %v957, 4294901760
    %v1392 = vsub.f32 %v957, %v1391
    %1393 = vmatpush.msra.mxu0 %v1392
    %v1394 = vand.u32 %v956, 4294901760
    %v1395 = vsub.f32 %v956, %v1394
    %1396 = vmatpush.msra.mxu0 %v1395
    %v1397 = vand.u32 %v955, 4294901760
    %v1398 = vsub.f32 %v955, %v1397
    %1399 = vmatpush.msra.mxu0 %v1398
    %v1400 = vand.u32 %v954, 4294901760
    %v1401 = vsub.f32 %v954, %v1400
    %1402 = vmatpush.msra.mxu0 %v1401
    %v1403 = vand.u32 %v1262, 4294901760
    %v1404 = vsub.f32 %v1262, %v1403
    %1405 = vmatmul.f32.gmra.mxu0 %v1404
    %v1406 = vpop.f32.mrf.mxu0
    %v1407 = vadd.f32 %v1365, %v1406
    %v1408 = vand.u32 %v1265, 4294901760
    %v1409 = vsub.f32 %v1265, %v1408
    %1410 = vmatmul.f32.gmra.mxu0 %v1409
    %v1411 = vpop.f32.mrf.mxu0
    %v1412 = vadd.f32 %v1369, %v1411
    %v1413 = vand.u32 %v1268, 4294901760
    %v1414 = vsub.f32 %v1268, %v1413
    %1415 = vmatmul.f32.gmra.mxu0 %v1414
    %v1416 = vpop.f32.mrf.mxu0
    %v1417 = vadd.f32 %v1373, %v1416
    %v1418 = vand.u32 %v1271, 4294901760
    %v1419 = vsub.f32 %v1271, %v1418
    %1420 = vmatmul.f32.gmra.mxu0 %v1419
    %v1421 = vpop.f32.mrf.mxu0
    %v1422 = vadd.f32 %v1377, %v1421
    %1423 = vdwg.mxu0
    %1424 = vmatpush.msra.mxu0 0.0
    %1425 = vmatpush.msra.mxu0 0.0
    %1426 = vmatpush.msra.mxu0 0.0
    %1427 = vmatpush.msra.mxu0 0.0
    %1428 = vmatpush.msra.mxu0 0.0
    %1429 = vmatpush.msra.mxu0 0.0
    %1430 = vmatpush.msra.mxu0 0.0
    %1431 = vmatpush.msra.mxu0 0.0
    %1432 = vmatpush.msra.mxu0 0.0
    %1433 = vmatpush.msra.mxu0 0.0
    %1434 = vmatpush.msra.mxu0 0.0
    %1435 = vmatpush.msra.mxu0 0.0
    %v1436 = vand.u32 %v957, 4294901760
    %1437 = vmatpush.msra.mxu0 %v1436
    %v1438 = vand.u32 %v956, 4294901760
    %1439 = vmatpush.msra.mxu0 %v1438
    %v1440 = vand.u32 %v955, 4294901760
    %1441 = vmatpush.msra.mxu0 %v1440
    %v1442 = vand.u32 %v954, 4294901760
    %1443 = vmatpush.msra.mxu0 %v1442
    %v1444 = vand.u32 %v1262, 4294901760
    %v1445 = vsub.f32 %v1262, %v1444
    %v1446 = vand.u32 %v1445, 4294901760
    %1447 = vmatmul.f32.gmra.mxu0 %v1446
    %v1448 = vpop.f32.mrf.mxu0
    %v1449 = vadd.f32 %v1407, %v1448
    %v1450 = vand.u32 %v1265, 4294901760
    %v1451 = vsub.f32 %v1265, %v1450
    %v1452 = vand.u32 %v1451, 4294901760
    %1453 = vmatmul.f32.gmra.mxu0 %v1452
    %v1454 = vpop.f32.mrf.mxu0
    %v1455 = vadd.f32 %v1412, %v1454
    %v1456 = vand.u32 %v1268, 4294901760
    %v1457 = vsub.f32 %v1268, %v1456
    %v1458 = vand.u32 %v1457, 4294901760
    %1459 = vmatmul.f32.gmra.mxu0 %v1458
    %v1460 = vpop.f32.mrf.mxu0
    %v1461 = vadd.f32 %v1417, %v1460
    %v1462 = vand.u32 %v1271, 4294901760
    %v1463 = vsub.f32 %v1271, %v1462
    %v1464 = vand.u32 %v1463, 4294901760
    %1465 = vmatmul.f32.gmra.mxu0 %v1464
    %v1466 = vpop.f32.mrf.mxu0
    %v1467 = vadd.f32 %v1422, %v1466
    %1468 = vdwg.mxu0
    %1469 = vmatpush.msra.mxu0 0.0
    %1470 = vmatpush.msra.mxu0 0.0
    %1471 = vmatpush.msra.mxu0 0.0
    %1472 = vmatpush.msra.mxu0 0.0
    %1473 = vmatpush.msra.mxu0 0.0
    %1474 = vmatpush.msra.mxu0 0.0
    %1475 = vmatpush.msra.mxu0 0.0
    %1476 = vmatpush.msra.mxu0 0.0
    %1477 = vmatpush.msra.mxu0 0.0
    %1478 = vmatpush.msra.mxu0 0.0
    %1479 = vmatpush.msra.mxu0 0.0
    %1480 = vmatpush.msra.mxu0 0.0
    %v1481 = vand.u32 %v957, 4294901760
    %v1482 = vsub.f32 %v957, %v1481
    %v1483 = vand.u32 %v1482, 4294901760
    %1484 = vmatpush.msra.mxu0 %v1483
    %v1485 = vand.u32 %v956, 4294901760
    %v1486 = vsub.f32 %v956, %v1485
    %v1487 = vand.u32 %v1486, 4294901760
    %1488 = vmatpush.msra.mxu0 %v1487
    %v1489 = vand.u32 %v955, 4294901760
    %v1490 = vsub.f32 %v955, %v1489
    %v1491 = vand.u32 %v1490, 4294901760
    %1492 = vmatpush.msra.mxu0 %v1491
    %v1493 = vand.u32 %v954, 4294901760
    %v1494 = vsub.f32 %v954, %v1493
    %v1495 = vand.u32 %v1494, 4294901760
    %1496 = vmatpush.msra.mxu0 %v1495
    %v1497 = vand.u32 %v1262, 4294901760
    %1498 = vmatmul.f32.gmra.mxu0 %v1497
    %v1499 = vpop.f32.mrf.mxu0
    %v1500 = vadd.f32 %v1449, %v1499
    %v1501 = vand.u32 %v1265, 4294901760
    %1502 = vmatmul.f32.gmra.mxu0 %v1501
    %v1503 = vpop.f32.mrf.mxu0
    %v1504 = vadd.f32 %v1455, %v1503
    %v1505 = vand.u32 %v1268, 4294901760
    %1506 = vmatmul.f32.gmra.mxu0 %v1505
    %v1507 = vpop.f32.mrf.mxu0
    %v1508 = vadd.f32 %v1461, %v1507
    %v1509 = vand.u32 %v1271, 4294901760
    %1510 = vmatmul.f32.gmra.mxu0 %v1509
    %v1511 = vpop.f32.mrf.mxu0
    %v1512 = vadd.f32 %v1467, %v1511
    %1513 = vdwg.mxu0
    %1514 = vmatpush.msra.mxu0 0.0
    %1515 = vmatpush.msra.mxu0 0.0
    %1516 = vmatpush.msra.mxu0 0.0
    %1517 = vmatpush.msra.mxu0 0.0
    %1518 = vmatpush.msra.mxu0 0.0
    %1519 = vmatpush.msra.mxu0 0.0
    %1520 = vmatpush.msra.mxu0 0.0
    %1521 = vmatpush.msra.mxu0 0.0
    %1522 = vmatpush.msra.mxu0 0.0
    %1523 = vmatpush.msra.mxu0 0.0
    %1524 = vmatpush.msra.mxu0 0.0
    %1525 = vmatpush.msra.mxu0 0.0
    %v1526 = vand.u32 %v957, 4294901760
    %1527 = vmatpush.msra.mxu0 %v1526
    %v1528 = vand.u32 %v956, 4294901760
    %1529 = vmatpush.msra.mxu0 %v1528
    %v1530 = vand.u32 %v955, 4294901760
    %1531 = vmatpush.msra.mxu0 %v1530
    %v1532 = vand.u32 %v954, 4294901760
    %1533 = vmatpush.msra.mxu0 %v1532
    %v1534 = vand.u32 %v1262, 4294901760
    %1535 = vmatmul.f32.gmra.mxu0 %v1534
    %v1536 = vpop.f32.mrf.mxu0
    %v1537 = vadd.f32 %v1500, %v1536
    %v1538 = vand.u32 %v1265, 4294901760
    %1539 = vmatmul.f32.gmra.mxu0 %v1538
    %v1540 = vpop.f32.mrf.mxu0
    %v1541 = vadd.f32 %v1504, %v1540
    %v1542 = vand.u32 %v1268, 4294901760
    %1543 = vmatmul.f32.gmra.mxu0 %v1542
    %v1544 = vpop.f32.mrf.mxu0
    %v1545 = vadd.f32 %v1508, %v1544
    %v1546 = vand.u32 %v1271, 4294901760
    %1547 = vmatmul.f32.gmra.mxu0 %v1546
    %v1548 = vpop.f32.mrf.mxu0
    %v1549 = vadd.f32 %v1512, %v1548
    %1550 = vdwg.mxu0
    %v1552 = vsel %vm970, %v924, 0
    %v1555 = vsel %vm970, %v928, 0
    %v1558 = vsel %vm970, %v932, 0
    %v1561 = vsel %vm970, %v936, 0
    %1563 = vmatpush.msra.mxu0 0.0
    %1564 = vmatpush.msra.mxu0 0.0
    %1565 = vmatpush.msra.mxu0 0.0
    %1566 = vmatpush.msra.mxu0 0.0
    %1567 = vmatpush.msra.mxu0 0.0
    %1568 = vmatpush.msra.mxu0 0.0
    %1569 = vmatpush.msra.mxu0 0.0
    %1570 = vmatpush.msra.mxu0 0.0
    %1571 = vmatpush.msra.mxu0 0.0
    %1572 = vmatpush.msra.mxu0 0.0
    %1573 = vmatpush.msra.mxu0 0.0
    %1574 = vmatpush.msra.mxu0 0.0
    %v1575 = vand.u32 %v965, 4294901760
    %1576 = vmatpush.msra.mxu0 %v1575
    %v1577 = vand.u32 %v964, 4294901760
    %1578 = vmatpush.msra.mxu0 %v1577
    %v1579 = vand.u32 %v963, 4294901760
    %1580 = vmatpush.msra.mxu0 %v1579
    %v1581 = vand.u32 %v962, 4294901760
    %1582 = vmatpush.msra.mxu0 %v1581
    %v1583 = vand.u32 %v1552, 4294901760
    %v1584 = vsub.f32 %v1552, %v1583
    %v1585 = vand.u32 %v1584, 4294901760
    %v1586 = vsub.f32 %v1584, %v1585
    %v1587 = vand.u32 %v1586, 4294901760
    %1588 = vmatmul.f32.gmra.mxu0 %v1587
    %v1589 = vpop.f32.mrf.mxu0
    %v1590 = vadd.f32 0.0, %v1589
    %v1591 = vand.u32 %v1555, 4294901760
    %v1592 = vsub.f32 %v1555, %v1591
    %v1593 = vand.u32 %v1592, 4294901760
    %v1594 = vsub.f32 %v1592, %v1593
    %v1595 = vand.u32 %v1594, 4294901760
    %1596 = vmatmul.f32.gmra.mxu0 %v1595
    %v1597 = vpop.f32.mrf.mxu0
    %v1598 = vadd.f32 0.0, %v1597
    %v1599 = vand.u32 %v1558, 4294901760
    %v1600 = vsub.f32 %v1558, %v1599
    %v1601 = vand.u32 %v1600, 4294901760
    %v1602 = vsub.f32 %v1600, %v1601
    %v1603 = vand.u32 %v1602, 4294901760
    %1604 = vmatmul.f32.gmra.mxu0 %v1603
    %v1605 = vpop.f32.mrf.mxu0
    %v1606 = vadd.f32 0.0, %v1605
    %v1607 = vand.u32 %v1561, 4294901760
    %v1608 = vsub.f32 %v1561, %v1607
    %v1609 = vand.u32 %v1608, 4294901760
    %v1610 = vsub.f32 %v1608, %v1609
    %v1611 = vand.u32 %v1610, 4294901760
    %1612 = vmatmul.f32.gmra.mxu0 %v1611
    %v1613 = vpop.f32.mrf.mxu0
    %v1614 = vadd.f32 0.0, %v1613
    %1615 = vdwg.mxu0
    %1616 = vmatpush.msra.mxu0 0.0
    %1617 = vmatpush.msra.mxu0 0.0
    %1618 = vmatpush.msra.mxu0 0.0
    %1619 = vmatpush.msra.mxu0 0.0
    %1620 = vmatpush.msra.mxu0 0.0
    %1621 = vmatpush.msra.mxu0 0.0
    %1622 = vmatpush.msra.mxu0 0.0
    %1623 = vmatpush.msra.mxu0 0.0
    %1624 = vmatpush.msra.mxu0 0.0
    %1625 = vmatpush.msra.mxu0 0.0
    %1626 = vmatpush.msra.mxu0 0.0
    %1627 = vmatpush.msra.mxu0 0.0
    %v1628 = vand.u32 %v965, 4294901760
    %v1629 = vsub.f32 %v965, %v1628
    %v1630 = vand.u32 %v1629, 4294901760
    %v1631 = vsub.f32 %v1629, %v1630
    %v1632 = vand.u32 %v1631, 4294901760
    %1633 = vmatpush.msra.mxu0 %v1632
    %v1634 = vand.u32 %v964, 4294901760
    %v1635 = vsub.f32 %v964, %v1634
    %v1636 = vand.u32 %v1635, 4294901760
    %v1637 = vsub.f32 %v1635, %v1636
    %v1638 = vand.u32 %v1637, 4294901760
    %1639 = vmatpush.msra.mxu0 %v1638
    %v1640 = vand.u32 %v963, 4294901760
    %v1641 = vsub.f32 %v963, %v1640
    %v1642 = vand.u32 %v1641, 4294901760
    %v1643 = vsub.f32 %v1641, %v1642
    %v1644 = vand.u32 %v1643, 4294901760
    %1645 = vmatpush.msra.mxu0 %v1644
    %v1646 = vand.u32 %v962, 4294901760
    %v1647 = vsub.f32 %v962, %v1646
    %v1648 = vand.u32 %v1647, 4294901760
    %v1649 = vsub.f32 %v1647, %v1648
    %v1650 = vand.u32 %v1649, 4294901760
    %1651 = vmatpush.msra.mxu0 %v1650
    %v1652 = vand.u32 %v1552, 4294901760
    %1653 = vmatmul.f32.gmra.mxu0 %v1652
    %v1654 = vpop.f32.mrf.mxu0
    %v1655 = vadd.f32 %v1590, %v1654
    %v1656 = vand.u32 %v1555, 4294901760
    %1657 = vmatmul.f32.gmra.mxu0 %v1656
    %v1658 = vpop.f32.mrf.mxu0
    %v1659 = vadd.f32 %v1598, %v1658
    %v1660 = vand.u32 %v1558, 4294901760
    %1661 = vmatmul.f32.gmra.mxu0 %v1660
    %v1662 = vpop.f32.mrf.mxu0
    %v1663 = vadd.f32 %v1606, %v1662
    %v1664 = vand.u32 %v1561, 4294901760
    %1665 = vmatmul.f32.gmra.mxu0 %v1664
    %v1666 = vpop.f32.mrf.mxu0
    %v1667 = vadd.f32 %v1614, %v1666
    %1668 = vdwg.mxu0
    %1669 = vmatpush.msra.mxu0 0.0
    %1670 = vmatpush.msra.mxu0 0.0
    %1671 = vmatpush.msra.mxu0 0.0
    %1672 = vmatpush.msra.mxu0 0.0
    %1673 = vmatpush.msra.mxu0 0.0
    %1674 = vmatpush.msra.mxu0 0.0
    %1675 = vmatpush.msra.mxu0 0.0
    %1676 = vmatpush.msra.mxu0 0.0
    %1677 = vmatpush.msra.mxu0 0.0
    %1678 = vmatpush.msra.mxu0 0.0
    %1679 = vmatpush.msra.mxu0 0.0
    %1680 = vmatpush.msra.mxu0 0.0
    %v1681 = vand.u32 %v965, 4294901760
    %v1682 = vsub.f32 %v965, %v1681
    %1683 = vmatpush.msra.mxu0 %v1682
    %v1684 = vand.u32 %v964, 4294901760
    %v1685 = vsub.f32 %v964, %v1684
    %1686 = vmatpush.msra.mxu0 %v1685
    %v1687 = vand.u32 %v963, 4294901760
    %v1688 = vsub.f32 %v963, %v1687
    %1689 = vmatpush.msra.mxu0 %v1688
    %v1690 = vand.u32 %v962, 4294901760
    %v1691 = vsub.f32 %v962, %v1690
    %1692 = vmatpush.msra.mxu0 %v1691
    %v1693 = vand.u32 %v1552, 4294901760
    %v1694 = vsub.f32 %v1552, %v1693
    %1695 = vmatmul.f32.gmra.mxu0 %v1694
    %v1696 = vpop.f32.mrf.mxu0
    %v1697 = vadd.f32 %v1655, %v1696
    %v1698 = vand.u32 %v1555, 4294901760
    %v1699 = vsub.f32 %v1555, %v1698
    %1700 = vmatmul.f32.gmra.mxu0 %v1699
    %v1701 = vpop.f32.mrf.mxu0
    %v1702 = vadd.f32 %v1659, %v1701
    %v1703 = vand.u32 %v1558, 4294901760
    %v1704 = vsub.f32 %v1558, %v1703
    %1705 = vmatmul.f32.gmra.mxu0 %v1704
    %v1706 = vpop.f32.mrf.mxu0
    %v1707 = vadd.f32 %v1663, %v1706
    %v1708 = vand.u32 %v1561, 4294901760
    %v1709 = vsub.f32 %v1561, %v1708
    %1710 = vmatmul.f32.gmra.mxu0 %v1709
    %v1711 = vpop.f32.mrf.mxu0
    %v1712 = vadd.f32 %v1667, %v1711
    %1713 = vdwg.mxu0
    %1714 = vmatpush.msra.mxu0 0.0
    %1715 = vmatpush.msra.mxu0 0.0
    %1716 = vmatpush.msra.mxu0 0.0
    %1717 = vmatpush.msra.mxu0 0.0
    %1718 = vmatpush.msra.mxu0 0.0
    %1719 = vmatpush.msra.mxu0 0.0
    %1720 = vmatpush.msra.mxu0 0.0
    %1721 = vmatpush.msra.mxu0 0.0
    %1722 = vmatpush.msra.mxu0 0.0
    %1723 = vmatpush.msra.mxu0 0.0
    %1724 = vmatpush.msra.mxu0 0.0
    %1725 = vmatpush.msra.mxu0 0.0
    %v1726 = vand.u32 %v965, 4294901760
    %1727 = vmatpush.msra.mxu0 %v1726
    %v1728 = vand.u32 %v964, 4294901760
    %1729 = vmatpush.msra.mxu0 %v1728
    %v1730 = vand.u32 %v963, 4294901760
    %1731 = vmatpush.msra.mxu0 %v1730
    %v1732 = vand.u32 %v962, 4294901760
    %1733 = vmatpush.msra.mxu0 %v1732
    %v1734 = vand.u32 %v1552, 4294901760
    %v1735 = vsub.f32 %v1552, %v1734
    %v1736 = vand.u32 %v1735, 4294901760
    %1737 = vmatmul.f32.gmra.mxu0 %v1736
    %v1738 = vpop.f32.mrf.mxu0
    %v1739 = vadd.f32 %v1697, %v1738
    %v1740 = vand.u32 %v1555, 4294901760
    %v1741 = vsub.f32 %v1555, %v1740
    %v1742 = vand.u32 %v1741, 4294901760
    %1743 = vmatmul.f32.gmra.mxu0 %v1742
    %v1744 = vpop.f32.mrf.mxu0
    %v1745 = vadd.f32 %v1702, %v1744
    %v1746 = vand.u32 %v1558, 4294901760
    %v1747 = vsub.f32 %v1558, %v1746
    %v1748 = vand.u32 %v1747, 4294901760
    %1749 = vmatmul.f32.gmra.mxu0 %v1748
    %v1750 = vpop.f32.mrf.mxu0
    %v1751 = vadd.f32 %v1707, %v1750
    %v1752 = vand.u32 %v1561, 4294901760
    %v1753 = vsub.f32 %v1561, %v1752
    %v1754 = vand.u32 %v1753, 4294901760
    %1755 = vmatmul.f32.gmra.mxu0 %v1754
    %v1756 = vpop.f32.mrf.mxu0
    %v1757 = vadd.f32 %v1712, %v1756
    %1758 = vdwg.mxu0
    %1759 = vmatpush.msra.mxu0 0.0
    %1760 = vmatpush.msra.mxu0 0.0
    %1761 = vmatpush.msra.mxu0 0.0
    %1762 = vmatpush.msra.mxu0 0.0
    %1763 = vmatpush.msra.mxu0 0.0
    %1764 = vmatpush.msra.mxu0 0.0
    %1765 = vmatpush.msra.mxu0 0.0
    %1766 = vmatpush.msra.mxu0 0.0
    %1767 = vmatpush.msra.mxu0 0.0
    %1768 = vmatpush.msra.mxu0 0.0
    %1769 = vmatpush.msra.mxu0 0.0
    %1770 = vmatpush.msra.mxu0 0.0
    %v1771 = vand.u32 %v965, 4294901760
    %v1772 = vsub.f32 %v965, %v1771
    %v1773 = vand.u32 %v1772, 4294901760
    %1774 = vmatpush.msra.mxu0 %v1773
    %v1775 = vand.u32 %v964, 4294901760
    %v1776 = vsub.f32 %v964, %v1775
    %v1777 = vand.u32 %v1776, 4294901760
    %1778 = vmatpush.msra.mxu0 %v1777
    %v1779 = vand.u32 %v963, 4294901760
    %v1780 = vsub.f32 %v963, %v1779
    %v1781 = vand.u32 %v1780, 4294901760
    %1782 = vmatpush.msra.mxu0 %v1781
    %v1783 = vand.u32 %v962, 4294901760
    %v1784 = vsub.f32 %v962, %v1783
    %v1785 = vand.u32 %v1784, 4294901760
    %1786 = vmatpush.msra.mxu0 %v1785
    %v1787 = vand.u32 %v1552, 4294901760
    %1788 = vmatmul.f32.gmra.mxu0 %v1787
    %v1789 = vpop.f32.mrf.mxu0
    %v1790 = vadd.f32 %v1739, %v1789
    %v1791 = vand.u32 %v1555, 4294901760
    %1792 = vmatmul.f32.gmra.mxu0 %v1791
    %v1793 = vpop.f32.mrf.mxu0
    %v1794 = vadd.f32 %v1745, %v1793
    %v1795 = vand.u32 %v1558, 4294901760
    %1796 = vmatmul.f32.gmra.mxu0 %v1795
    %v1797 = vpop.f32.mrf.mxu0
    %v1798 = vadd.f32 %v1751, %v1797
    %v1799 = vand.u32 %v1561, 4294901760
    %1800 = vmatmul.f32.gmra.mxu0 %v1799
    %v1801 = vpop.f32.mrf.mxu0
    %v1802 = vadd.f32 %v1757, %v1801
    %1803 = vdwg.mxu0
    %1804 = vmatpush.msra.mxu0 0.0
    %1805 = vmatpush.msra.mxu0 0.0
    %1806 = vmatpush.msra.mxu0 0.0
    %1807 = vmatpush.msra.mxu0 0.0
    %1808 = vmatpush.msra.mxu0 0.0
    %1809 = vmatpush.msra.mxu0 0.0
    %1810 = vmatpush.msra.mxu0 0.0
    %1811 = vmatpush.msra.mxu0 0.0
    %1812 = vmatpush.msra.mxu0 0.0
    %1813 = vmatpush.msra.mxu0 0.0
    %1814 = vmatpush.msra.mxu0 0.0
    %1815 = vmatpush.msra.mxu0 0.0
    %v1816 = vand.u32 %v965, 4294901760
    %1817 = vmatpush.msra.mxu0 %v1816
    %v1818 = vand.u32 %v964, 4294901760
    %1819 = vmatpush.msra.mxu0 %v1818
    %v1820 = vand.u32 %v963, 4294901760
    %1821 = vmatpush.msra.mxu0 %v1820
    %v1822 = vand.u32 %v962, 4294901760
    %1823 = vmatpush.msra.mxu0 %v1822
    %v1824 = vand.u32 %v1552, 4294901760
    %1825 = vmatmul.f32.gmra.mxu0 %v1824
    %v1826 = vpop.f32.mrf.mxu0
    %v1827 = vadd.f32 %v1790, %v1826
    %v1828 = vand.u32 %v1555, 4294901760
    %1829 = vmatmul.f32.gmra.mxu0 %v1828
    %v1830 = vpop.f32.mrf.mxu0
    %v1831 = vadd.f32 %v1794, %v1830
    %v1832 = vand.u32 %v1558, 4294901760
    %1833 = vmatmul.f32.gmra.mxu0 %v1832
    %v1834 = vpop.f32.mrf.mxu0
    %v1835 = vadd.f32 %v1798, %v1834
    %v1836 = vand.u32 %v1561, 4294901760
    %1837 = vmatmul.f32.gmra.mxu0 %v1836
    %v1838 = vpop.f32.mrf.mxu0
    %v1839 = vadd.f32 %v1802, %v1838
    %1840 = vdwg.mxu0
    %v1841 = vadd.f32 %v1537, %v1827
    %v1842 = vadd.f32 %v1541, %v1831
    %v1843 = vadd.f32 %v1545, %v1835
    %v1844 = vadd.f32 %v1549, %v1839
    %v1846 = vsel %vm970, %v940, 0
    %v1849 = vsel %vm970, %v944, 0
    %v1852 = vsel %vm970, %v948, 0
    %v1855 = vsel %vm970, %v952, 0
    %1857 = vmatpush.msra.mxu0 0.0
    %1858 = vmatpush.msra.mxu0 0.0
    %1859 = vmatpush.msra.mxu0 0.0
    %1860 = vmatpush.msra.mxu0 0.0
    %1861 = vmatpush.msra.mxu0 0.0
    %1862 = vmatpush.msra.mxu0 0.0
    %1863 = vmatpush.msra.mxu0 0.0
    %1864 = vmatpush.msra.mxu0 0.0
    %1865 = vmatpush.msra.mxu0 0.0
    %1866 = vmatpush.msra.mxu0 0.0
    %1867 = vmatpush.msra.mxu0 0.0
    %1868 = vmatpush.msra.mxu0 0.0
    %v1869 = vand.u32 %v969, 4294901760
    %1870 = vmatpush.msra.mxu0 %v1869
    %v1871 = vand.u32 %v968, 4294901760
    %1872 = vmatpush.msra.mxu0 %v1871
    %v1873 = vand.u32 %v967, 4294901760
    %1874 = vmatpush.msra.mxu0 %v1873
    %v1875 = vand.u32 %v966, 4294901760
    %1876 = vmatpush.msra.mxu0 %v1875
    %v1877 = vand.u32 %v1846, 4294901760
    %v1878 = vsub.f32 %v1846, %v1877
    %v1879 = vand.u32 %v1878, 4294901760
    %v1880 = vsub.f32 %v1878, %v1879
    %v1881 = vand.u32 %v1880, 4294901760
    %1882 = vmatmul.f32.gmra.mxu0 %v1881
    %v1883 = vpop.f32.mrf.mxu0
    %v1884 = vadd.f32 0.0, %v1883
    %v1885 = vand.u32 %v1849, 4294901760
    %v1886 = vsub.f32 %v1849, %v1885
    %v1887 = vand.u32 %v1886, 4294901760
    %v1888 = vsub.f32 %v1886, %v1887
    %v1889 = vand.u32 %v1888, 4294901760
    %1890 = vmatmul.f32.gmra.mxu0 %v1889
    %v1891 = vpop.f32.mrf.mxu0
    %v1892 = vadd.f32 0.0, %v1891
    %v1893 = vand.u32 %v1852, 4294901760
    %v1894 = vsub.f32 %v1852, %v1893
    %v1895 = vand.u32 %v1894, 4294901760
    %v1896 = vsub.f32 %v1894, %v1895
    %v1897 = vand.u32 %v1896, 4294901760
    %1898 = vmatmul.f32.gmra.mxu0 %v1897
    %v1899 = vpop.f32.mrf.mxu0
    %v1900 = vadd.f32 0.0, %v1899
    %v1901 = vand.u32 %v1855, 4294901760
    %v1902 = vsub.f32 %v1855, %v1901
    %v1903 = vand.u32 %v1902, 4294901760
    %v1904 = vsub.f32 %v1902, %v1903
    %v1905 = vand.u32 %v1904, 4294901760
    %1906 = vmatmul.f32.gmra.mxu0 %v1905
    %v1907 = vpop.f32.mrf.mxu0
    %v1908 = vadd.f32 0.0, %v1907
    %1909 = vdwg.mxu0
    %1910 = vmatpush.msra.mxu0 0.0
    %1911 = vmatpush.msra.mxu0 0.0
    %1912 = vmatpush.msra.mxu0 0.0
    %1913 = vmatpush.msra.mxu0 0.0
    %1914 = vmatpush.msra.mxu0 0.0
    %1915 = vmatpush.msra.mxu0 0.0
    %1916 = vmatpush.msra.mxu0 0.0
    %1917 = vmatpush.msra.mxu0 0.0
    %1918 = vmatpush.msra.mxu0 0.0
    %1919 = vmatpush.msra.mxu0 0.0
    %1920 = vmatpush.msra.mxu0 0.0
    %1921 = vmatpush.msra.mxu0 0.0
    %v1922 = vand.u32 %v969, 4294901760
    %v1923 = vsub.f32 %v969, %v1922
    %v1924 = vand.u32 %v1923, 4294901760
    %v1925 = vsub.f32 %v1923, %v1924
    %v1926 = vand.u32 %v1925, 4294901760
    %1927 = vmatpush.msra.mxu0 %v1926
    %v1928 = vand.u32 %v968, 4294901760
    %v1929 = vsub.f32 %v968, %v1928
    %v1930 = vand.u32 %v1929, 4294901760
    %v1931 = vsub.f32 %v1929, %v1930
    %v1932 = vand.u32 %v1931, 4294901760
    %1933 = vmatpush.msra.mxu0 %v1932
    %v1934 = vand.u32 %v967, 4294901760
    %v1935 = vsub.f32 %v967, %v1934
    %v1936 = vand.u32 %v1935, 4294901760
    %v1937 = vsub.f32 %v1935, %v1936
    %v1938 = vand.u32 %v1937, 4294901760
    %1939 = vmatpush.msra.mxu0 %v1938
    %v1940 = vand.u32 %v966, 4294901760
    %v1941 = vsub.f32 %v966, %v1940
    %v1942 = vand.u32 %v1941, 4294901760
    %v1943 = vsub.f32 %v1941, %v1942
    %v1944 = vand.u32 %v1943, 4294901760
    %1945 = vmatpush.msra.mxu0 %v1944
    %v1946 = vand.u32 %v1846, 4294901760
    %1947 = vmatmul.f32.gmra.mxu0 %v1946
    %v1948 = vpop.f32.mrf.mxu0
    %v1949 = vadd.f32 %v1884, %v1948
    %v1950 = vand.u32 %v1849, 4294901760
    %1951 = vmatmul.f32.gmra.mxu0 %v1950
    %v1952 = vpop.f32.mrf.mxu0
    %v1953 = vadd.f32 %v1892, %v1952
    %v1954 = vand.u32 %v1852, 4294901760
    %1955 = vmatmul.f32.gmra.mxu0 %v1954
    %v1956 = vpop.f32.mrf.mxu0
    %v1957 = vadd.f32 %v1900, %v1956
    %v1958 = vand.u32 %v1855, 4294901760
    %1959 = vmatmul.f32.gmra.mxu0 %v1958
    %v1960 = vpop.f32.mrf.mxu0
    %v1961 = vadd.f32 %v1908, %v1960
    %1962 = vdwg.mxu0
    %1963 = vmatpush.msra.mxu0 0.0
    %1964 = vmatpush.msra.mxu0 0.0
    %1965 = vmatpush.msra.mxu0 0.0
    %1966 = vmatpush.msra.mxu0 0.0
    %1967 = vmatpush.msra.mxu0 0.0
    %1968 = vmatpush.msra.mxu0 0.0
    %1969 = vmatpush.msra.mxu0 0.0
    %1970 = vmatpush.msra.mxu0 0.0
    %1971 = vmatpush.msra.mxu0 0.0
    %1972 = vmatpush.msra.mxu0 0.0
    %1973 = vmatpush.msra.mxu0 0.0
    %1974 = vmatpush.msra.mxu0 0.0
    %v1975 = vand.u32 %v969, 4294901760
    %v1976 = vsub.f32 %v969, %v1975
    %1977 = vmatpush.msra.mxu0 %v1976
    %v1978 = vand.u32 %v968, 4294901760
    %v1979 = vsub.f32 %v968, %v1978
    %1980 = vmatpush.msra.mxu0 %v1979
    %v1981 = vand.u32 %v967, 4294901760
    %v1982 = vsub.f32 %v967, %v1981
    %1983 = vmatpush.msra.mxu0 %v1982
    %v1984 = vand.u32 %v966, 4294901760
    %v1985 = vsub.f32 %v966, %v1984
    %1986 = vmatpush.msra.mxu0 %v1985
    %v1987 = vand.u32 %v1846, 4294901760
    %v1988 = vsub.f32 %v1846, %v1987
    %1989 = vmatmul.f32.gmra.mxu0 %v1988
    %v1990 = vpop.f32.mrf.mxu0
    %v1991 = vadd.f32 %v1949, %v1990
    %v1992 = vand.u32 %v1849, 4294901760
    %v1993 = vsub.f32 %v1849, %v1992
    %1994 = vmatmul.f32.gmra.mxu0 %v1993
    %v1995 = vpop.f32.mrf.mxu0
    %v1996 = vadd.f32 %v1953, %v1995
    %v1997 = vand.u32 %v1852, 4294901760
    %v1998 = vsub.f32 %v1852, %v1997
    %1999 = vmatmul.f32.gmra.mxu0 %v1998
    %v2000 = vpop.f32.mrf.mxu0
    %v2001 = vadd.f32 %v1957, %v2000
    %v2002 = vand.u32 %v1855, 4294901760
    %v2003 = vsub.f32 %v1855, %v2002
    %2004 = vmatmul.f32.gmra.mxu0 %v2003
    %v2005 = vpop.f32.mrf.mxu0
    %v2006 = vadd.f32 %v1961, %v2005
    %2007 = vdwg.mxu0
    %2008 = vmatpush.msra.mxu0 0.0
    %2009 = vmatpush.msra.mxu0 0.0
    %2010 = vmatpush.msra.mxu0 0.0
    %2011 = vmatpush.msra.mxu0 0.0
    %2012 = vmatpush.msra.mxu0 0.0
    %2013 = vmatpush.msra.mxu0 0.0
    %2014 = vmatpush.msra.mxu0 0.0
    %2015 = vmatpush.msra.mxu0 0.0
    %2016 = vmatpush.msra.mxu0 0.0
    %2017 = vmatpush.msra.mxu0 0.0
    %2018 = vmatpush.msra.mxu0 0.0
    %2019 = vmatpush.msra.mxu0 0.0
    %v2020 = vand.u32 %v969, 4294901760
    %2021 = vmatpush.msra.mxu0 %v2020
    %v2022 = vand.u32 %v968, 4294901760
    %2023 = vmatpush.msra.mxu0 %v2022
    %v2024 = vand.u32 %v967, 4294901760
    %2025 = vmatpush.msra.mxu0 %v2024
    %v2026 = vand.u32 %v966, 4294901760
    %2027 = vmatpush.msra.mxu0 %v2026
    %v2028 = vand.u32 %v1846, 4294901760
    %v2029 = vsub.f32 %v1846, %v2028
    %v2030 = vand.u32 %v2029, 4294901760
    %2031 = vmatmul.f32.gmra.mxu0 %v2030
    %v2032 = vpop.f32.mrf.mxu0
    %v2033 = vadd.f32 %v1991, %v2032
    %v2034 = vand.u32 %v1849, 4294901760
    %v2035 = vsub.f32 %v1849, %v2034
    %v2036 = vand.u32 %v2035, 4294901760
    %2037 = vmatmul.f32.gmra.mxu0 %v2036
    %v2038 = vpop.f32.mrf.mxu0
    %v2039 = vadd.f32 %v1996, %v2038
    %v2040 = vand.u32 %v1852, 4294901760
    %v2041 = vsub.f32 %v1852, %v2040
    %v2042 = vand.u32 %v2041, 4294901760
    %2043 = vmatmul.f32.gmra.mxu0 %v2042
    %v2044 = vpop.f32.mrf.mxu0
    %v2045 = vadd.f32 %v2001, %v2044
    %v2046 = vand.u32 %v1855, 4294901760
    %v2047 = vsub.f32 %v1855, %v2046
    %v2048 = vand.u32 %v2047, 4294901760
    %2049 = vmatmul.f32.gmra.mxu0 %v2048
    %v2050 = vpop.f32.mrf.mxu0
    %v2051 = vadd.f32 %v2006, %v2050
    %2052 = vdwg.mxu0
    %2053 = vmatpush.msra.mxu0 0.0
    %2054 = vmatpush.msra.mxu0 0.0
    %2055 = vmatpush.msra.mxu0 0.0
    %2056 = vmatpush.msra.mxu0 0.0
    %2057 = vmatpush.msra.mxu0 0.0
    %2058 = vmatpush.msra.mxu0 0.0
    %2059 = vmatpush.msra.mxu0 0.0
    %2060 = vmatpush.msra.mxu0 0.0
    %2061 = vmatpush.msra.mxu0 0.0
    %2062 = vmatpush.msra.mxu0 0.0
    %2063 = vmatpush.msra.mxu0 0.0
    %2064 = vmatpush.msra.mxu0 0.0
    %v2065 = vand.u32 %v969, 4294901760
    %v2066 = vsub.f32 %v969, %v2065
    %v2067 = vand.u32 %v2066, 4294901760
    %2068 = vmatpush.msra.mxu0 %v2067
    %v2069 = vand.u32 %v968, 4294901760
    %v2070 = vsub.f32 %v968, %v2069
    %v2071 = vand.u32 %v2070, 4294901760
    %2072 = vmatpush.msra.mxu0 %v2071
    %v2073 = vand.u32 %v967, 4294901760
    %v2074 = vsub.f32 %v967, %v2073
    %v2075 = vand.u32 %v2074, 4294901760
    %2076 = vmatpush.msra.mxu0 %v2075
    %v2077 = vand.u32 %v966, 4294901760
    %v2078 = vsub.f32 %v966, %v2077
    %v2079 = vand.u32 %v2078, 4294901760
    %2080 = vmatpush.msra.mxu0 %v2079
    %v2081 = vand.u32 %v1846, 4294901760
    %2082 = vmatmul.f32.gmra.mxu0 %v2081
    %v2083 = vpop.f32.mrf.mxu0
    %v2084 = vadd.f32 %v2033, %v2083
    %v2085 = vand.u32 %v1849, 4294901760
    %2086 = vmatmul.f32.gmra.mxu0 %v2085
    %v2087 = vpop.f32.mrf.mxu0
    %v2088 = vadd.f32 %v2039, %v2087
    %v2089 = vand.u32 %v1852, 4294901760
    %2090 = vmatmul.f32.gmra.mxu0 %v2089
    %v2091 = vpop.f32.mrf.mxu0
    %v2092 = vadd.f32 %v2045, %v2091
    %v2093 = vand.u32 %v1855, 4294901760
    %2094 = vmatmul.f32.gmra.mxu0 %v2093
    %v2095 = vpop.f32.mrf.mxu0
    %v2096 = vadd.f32 %v2051, %v2095
    %2097 = vdwg.mxu0
    %2098 = vmatpush.msra.mxu0 0.0
    %2099 = vmatpush.msra.mxu0 0.0
    %2100 = vmatpush.msra.mxu0 0.0
    %2101 = vmatpush.msra.mxu0 0.0
    %2102 = vmatpush.msra.mxu0 0.0
    %2103 = vmatpush.msra.mxu0 0.0
    %2104 = vmatpush.msra.mxu0 0.0
    %2105 = vmatpush.msra.mxu0 0.0
    %2106 = vmatpush.msra.mxu0 0.0
    %2107 = vmatpush.msra.mxu0 0.0
    %2108 = vmatpush.msra.mxu0 0.0
    %2109 = vmatpush.msra.mxu0 0.0
    %v2110 = vand.u32 %v969, 4294901760
    %2111 = vmatpush.msra.mxu0 %v2110
    %v2112 = vand.u32 %v968, 4294901760
    %2113 = vmatpush.msra.mxu0 %v2112
    %v2114 = vand.u32 %v967, 4294901760
    %2115 = vmatpush.msra.mxu0 %v2114
    %v2116 = vand.u32 %v966, 4294901760
    %2117 = vmatpush.msra.mxu0 %v2116
    %v2118 = vand.u32 %v1846, 4294901760
    %2119 = vmatmul.f32.gmra.mxu0 %v2118
    %v2120 = vpop.f32.mrf.mxu0
    %v2121 = vadd.f32 %v2084, %v2120
    %v2122 = vand.u32 %v1849, 4294901760
    %2123 = vmatmul.f32.gmra.mxu0 %v2122
    %v2124 = vpop.f32.mrf.mxu0
    %v2125 = vadd.f32 %v2088, %v2124
    %v2126 = vand.u32 %v1852, 4294901760
    %2127 = vmatmul.f32.gmra.mxu0 %v2126
    %v2128 = vpop.f32.mrf.mxu0
    %v2129 = vadd.f32 %v2092, %v2128
    %v2130 = vand.u32 %v1855, 4294901760
    %2131 = vmatmul.f32.gmra.mxu0 %v2130
    %v2132 = vpop.f32.mrf.mxu0
    %v2133 = vadd.f32 %v2096, %v2132
    %2134 = vdwg.mxu0
    %v2135 = vadd.f32 %v1841, %v2121
    %v2136 = vadd.f32 %v1842, %v2125
    %v2137 = vadd.f32 %v1843, %v2129
    %v2138 = vadd.f32 %v1844, %v2133
    %v2139 = vrot.slane %v2135, 4
    %v2140 = vmax.f32 %v2135, %v2139
    %v2141 = vrot.slane %v2140, 2
    %v2142 = vmax.f32 %v2140, %v2141
    %v2143 = vrot.slane %v2142, 1
    %v2144 = vmax.f32 %v2142, %v2143
    %v2145 = vrot.slane %v2136, 4
    %v2146 = vmax.f32 %v2136, %v2145
    %v2147 = vrot.slane %v2146, 2
    %v2148 = vmax.f32 %v2146, %v2147
    %v2149 = vrot.slane %v2148, 1
    %v2150 = vmax.f32 %v2148, %v2149
    %v2151 = vrot.slane %v2137, 4
    %v2152 = vmax.f32 %v2137, %v2151
    %v2153 = vrot.slane %v2152, 2
    %v2154 = vmax.f32 %v2152, %v2153
    %v2155 = vrot.slane %v2154, 1
    %v2156 = vmax.f32 %v2154, %v2155
    %v2157 = vrot.slane %v2138, 4
    %v2158 = vmax.f32 %v2138, %v2157
    %v2159 = vrot.slane %v2158, 2
    %v2160 = vmax.f32 %v2158, %v2159
    %v2161 = vrot.slane %v2160, 1
    %v2162 = vmax.f32 %v2160, %v2161
    %v2163 = vld [vmem:[%s3] sm:$0x1]
    %v2165 = vperm.slane %v2163, 0
    %v2167 = vadd.f32 %v2144, %v2165
    %v2168 = vadd.f32 %v2150, %v2165
    %v2169 = vadd.f32 %v2156, %v2165
    %v2170 = vadd.f32 %v2162, %v2165
    %v2171 = vmax.f32 %v2167, 0.0
    %v2172 = vmax.f32 %v2168, 0.0
    %v2173 = vmax.f32 %v2169, 0.0
    %v2174 = vmax.f32 %v2170, 0.0
    %v2179 = vrot.slane %v2172, 7
    %vm2180 = vcmask 1041409
    %v2181 = vsel %vm2180, %v2179, %v2171
    %v2182 = vrot.slane %v2173, 6
    %vm2183 = vcmask 1042434
    %v2184 = vsel %vm2183, %v2182, %v2181
    %v2185 = vrot.slane %v2174, 5
    %vm2186 = vcmask 1043459
    %v2187 = vsel %vm2186, %v2185, %v2184
    %2189 = vmatpush.xpose.msra.mxu0 0.0
    %2190 = vmatpush.xpose.msra.mxu0 0.0
    %2191 = vmatpush.xpose.msra.mxu0 0.0
    %2192 = vmatpush.xpose.msra.mxu0 0.0
    %2193 = vmatpush.xpose.msra.mxu0 0.0
    %2194 = vmatpush.xpose.msra.mxu0 0.0
    %2195 = vmatpush.xpose.msra.mxu0 0.0
    %2196 = vmatpush.xpose.msra.mxu0 0.0
    %2197 = vmatpush.xpose.msra.mxu0 0.0
    %2198 = vmatpush.xpose.msra.mxu0 0.0
    %2199 = vmatpush.xpose.msra.mxu0 0.0
    %2200 = vmatpush.xpose.msra.mxu0 0.0
    %2201 = vmatpush.xpose.msra.mxu0 0.0
    %2202 = vmatpush.xpose.msra.mxu0 0.0
    %2203 = vmatpush.xpose.msra.mxu0 0.0
    %v2204 = vand.u32 %v2187, 4294901760
    %2205 = vmatpush.xpose.msra.mxu0 %v2204
    %v2206 = vand.u32 %v2187, 4294901760
    %v2207 = vsub.f32 %v2187, %v2206
    %v2208 = vand.u32 %v2207, 4294901760
    %v2209 = vsub.f32 %v2207, %v2208
    %v2210 = vand.u32 %v2209, 4294901760
    %2211 = vmatmul.f32.gmra.mxu0 %v2210
    %v2212 = vpop.f32.mrf.mxu0
    %v2213 = vadd.f32 0.0, %v2212
    %2214 = vdwg.mxu0
    %2215 = vmatpush.xpose.msra.mxu0 0.0
    %2216 = vmatpush.xpose.msra.mxu0 0.0
    %2217 = vmatpush.xpose.msra.mxu0 0.0
    %2218 = vmatpush.xpose.msra.mxu0 0.0
    %2219 = vmatpush.xpose.msra.mxu0 0.0
    %2220 = vmatpush.xpose.msra.mxu0 0.0
    %2221 = vmatpush.xpose.msra.mxu0 0.0
    %2222 = vmatpush.xpose.msra.mxu0 0.0
    %2223 = vmatpush.xpose.msra.mxu0 0.0
    %2224 = vmatpush.xpose.msra.mxu0 0.0
    %2225 = vmatpush.xpose.msra.mxu0 0.0
    %2226 = vmatpush.xpose.msra.mxu0 0.0
    %2227 = vmatpush.xpose.msra.mxu0 0.0
    %2228 = vmatpush.xpose.msra.mxu0 0.0
    %2229 = vmatpush.xpose.msra.mxu0 0.0
    %v2230 = vand.u32 %v2187, 4294901760
    %v2231 = vsub.f32 %v2187, %v2230
    %v2232 = vand.u32 %v2231, 4294901760
    %v2233 = vsub.f32 %v2231, %v2232
    %v2234 = vand.u32 %v2233, 4294901760
    %2235 = vmatpush.xpose.msra.mxu0 %v2234
    %v2236 = vand.u32 %v2187, 4294901760
    %2237 = vmatmul.f32.gmra.mxu0 %v2236
    %v2238 = vpop.f32.mrf.mxu0
    %v2239 = vadd.f32 %v2213, %v2238
    %2240 = vdwg.mxu0
    %2241 = vmatpush.xpose.msra.mxu0 0.0
    %2242 = vmatpush.xpose.msra.mxu0 0.0
    %2243 = vmatpush.xpose.msra.mxu0 0.0
    %2244 = vmatpush.xpose.msra.mxu0 0.0
    %2245 = vmatpush.xpose.msra.mxu0 0.0
    %2246 = vmatpush.xpose.msra.mxu0 0.0
    %2247 = vmatpush.xpose.msra.mxu0 0.0
    %2248 = vmatpush.xpose.msra.mxu0 0.0
    %2249 = vmatpush.xpose.msra.mxu0 0.0
    %2250 = vmatpush.xpose.msra.mxu0 0.0
    %2251 = vmatpush.xpose.msra.mxu0 0.0
    %2252 = vmatpush.xpose.msra.mxu0 0.0
    %2253 = vmatpush.xpose.msra.mxu0 0.0
    %2254 = vmatpush.xpose.msra.mxu0 0.0
    %2255 = vmatpush.xpose.msra.mxu0 0.0
    %v2256 = vand.u32 %v2187, 4294901760
    %v2257 = vsub.f32 %v2187, %v2256
    %2258 = vmatpush.xpose.msra.mxu0 %v2257
    %v2259 = vand.u32 %v2187, 4294901760
    %v2260 = vsub.f32 %v2187, %v2259
    %2261 = vmatmul.f32.gmra.mxu0 %v2260
    %v2262 = vpop.f32.mrf.mxu0
    %v2263 = vadd.f32 %v2239, %v2262
    %2264 = vdwg.mxu0
    %2265 = vmatpush.xpose.msra.mxu0 0.0
    %2266 = vmatpush.xpose.msra.mxu0 0.0
    %2267 = vmatpush.xpose.msra.mxu0 0.0
    %2268 = vmatpush.xpose.msra.mxu0 0.0
    %2269 = vmatpush.xpose.msra.mxu0 0.0
    %2270 = vmatpush.xpose.msra.mxu0 0.0
    %2271 = vmatpush.xpose.msra.mxu0 0.0
    %2272 = vmatpush.xpose.msra.mxu0 0.0
    %2273 = vmatpush.xpose.msra.mxu0 0.0
    %2274 = vmatpush.xpose.msra.mxu0 0.0
    %2275 = vmatpush.xpose.msra.mxu0 0.0
    %2276 = vmatpush.xpose.msra.mxu0 0.0
    %2277 = vmatpush.xpose.msra.mxu0 0.0
    %2278 = vmatpush.xpose.msra.mxu0 0.0
    %2279 = vmatpush.xpose.msra.mxu0 0.0
    %v2280 = vand.u32 %v2187, 4294901760
    %2281 = vmatpush.xpose.msra.mxu0 %v2280
    %v2282 = vand.u32 %v2187, 4294901760
    %v2283 = vsub.f32 %v2187, %v2282
    %v2284 = vand.u32 %v2283, 4294901760
    %2285 = vmatmul.f32.gmra.mxu0 %v2284
    %v2286 = vpop.f32.mrf.mxu0
    %v2287 = vadd.f32 %v2263, %v2286
    %2288 = vdwg.mxu0
    %2289 = vmatpush.xpose.msra.mxu0 0.0
    %2290 = vmatpush.xpose.msra.mxu0 0.0
    %2291 = vmatpush.xpose.msra.mxu0 0.0
    %2292 = vmatpush.xpose.msra.mxu0 0.0
    %2293 = vmatpush.xpose.msra.mxu0 0.0
    %2294 = vmatpush.xpose.msra.mxu0 0.0
    %2295 = vmatpush.xpose.msra.mxu0 0.0
    %2296 = vmatpush.xpose.msra.mxu0 0.0
    %2297 = vmatpush.xpose.msra.mxu0 0.0
    %2298 = vmatpush.xpose.msra.mxu0 0.0
    %2299 = vmatpush.xpose.msra.mxu0 0.0
    %2300 = vmatpush.xpose.msra.mxu0 0.0
    %2301 = vmatpush.xpose.msra.mxu0 0.0
    %2302 = vmatpush.xpose.msra.mxu0 0.0
    %2303 = vmatpush.xpose.msra.mxu0 0.0
    %v2304 = vand.u32 %v2187, 4294901760
    %v2305 = vsub.f32 %v2187, %v2304
    %v2306 = vand.u32 %v2305, 4294901760
    %2307 = vmatpush.xpose.msra.mxu0 %v2306
    %v2308 = vand.u32 %v2187, 4294901760
    %2309 = vmatmul.f32.gmra.mxu0 %v2308
    %v2310 = vpop.f32.mrf.mxu0
    %v2311 = vadd.f32 %v2287, %v2310
    %2312 = vdwg.mxu0
    %2313 = vmatpush.xpose.msra.mxu0 0.0
    %2314 = vmatpush.xpose.msra.mxu0 0.0
    %2315 = vmatpush.xpose.msra.mxu0 0.0
    %2316 = vmatpush.xpose.msra.mxu0 0.0
    %2317 = vmatpush.xpose.msra.mxu0 0.0
    %2318 = vmatpush.xpose.msra.mxu0 0.0
    %2319 = vmatpush.xpose.msra.mxu0 0.0
    %2320 = vmatpush.xpose.msra.mxu0 0.0
    %2321 = vmatpush.xpose.msra.mxu0 0.0
    %2322 = vmatpush.xpose.msra.mxu0 0.0
    %2323 = vmatpush.xpose.msra.mxu0 0.0
    %2324 = vmatpush.xpose.msra.mxu0 0.0
    %2325 = vmatpush.xpose.msra.mxu0 0.0
    %2326 = vmatpush.xpose.msra.mxu0 0.0
    %2327 = vmatpush.xpose.msra.mxu0 0.0
    %v2328 = vand.u32 %v2187, 4294901760
    %2329 = vmatpush.xpose.msra.mxu0 %v2328
    %v2330 = vand.u32 %v2187, 4294901760
    %2331 = vmatmul.f32.gmra.mxu0 %v2330
    %v2332 = vpop.f32.mrf.mxu0
    %v2333 = vadd.f32 %v2311, %v2332
    %2334 = vdwg.mxu0
    %v2335 = vlaneseq
    %v2336 = vshrl.u32 %v2335, 7
    %vm2337 = vcmp.eq.s32.totalorder %v2336, %v35
    %v2338 = vsel %vm2337, %v2333, 0.0
    %vm2339 = vcmask 27648
    %v2340 = vsel %vm2339, %v2338, 0.0
    %v2341 = vrot.slane %v2340, 4
    %v2342 = vadd.f32 %v2340, %v2341
    %v2343 = vrot.slane %v2342, 2
    %v2344 = vadd.f32 %v2342, %v2343
    %v2345 = vrot.slane %v2344, 1
    %v2346 = vadd.f32 %v2344, %v2345
    %v2347 = vadd.s32 %v35, 2
    %vm2348 = vcmp.eq.s32.totalorder %v2336, %v2347
    %v2349 = vsel %vm2348, %v2333, 0.0
    %v2350 = vsel %vm2339, %v2349, 0.0
    %v2351 = vrot.slane %v2350, 4
    %v2352 = vadd.f32 %v2350, %v2351
    %v2353 = vrot.slane %v2352, 2
    %v2354 = vadd.f32 %v2352, %v2353
    %v2355 = vrot.slane %v2354, 1
    %v2356 = vadd.f32 %v2354, %v2355
    %2358 = vrot.lane.b32.xlu0 %v2346, 126
    %v2359 = vpop.permute.xlu0 %2358
    %v2361 = vmul.f32 %v2346, %v2359
    %v2362 = vmax.f32 %v2361, 1e-16
    %v2363 = vrsqrt.pop %v2362
    %v2364 = vmul.f32 %v2363, %v2362
    %v2365 = vmul.f32 %v2364, %v2363
    %v2366 = vmul.f32 0.5, %v2365
    %v2367 = vsub.f32 1.5, %v2366
    %v2368 = vmul.f32 %v2363, %v2367
    %vm2369 = vweird.f32 %v2362
    %vm2370 = vweird.f32 %v2363
    %vm2371 = vmor %vm2369, %vm2370
    %v2372 = vsel %vm2371, %v2363, %v2368
    %v2373 = vmul.f32 %v2356, %v2372
    %vm2374 = vcmask 8192
    %2375 = vst.msk [vmem:[#allocation2] sm:$0x1] %vm2374, %v2373
    // Predicated region
    $region18: #{tpu_custom_call.1} parent=1 // pred_check
      _
    $region19: #{tpu_custom_call.1} parent=1 // pred_check_branch
      %2377 = sbr.rel (0) target = $region21
    $region20: #{tpu_custom_call.1} parent=1 // pred_region
      %2379 = vsyncadd [#allocation3], 0
      %s2381 = sshll.u32 [#allocation2], 4
      %s2382 = int_to_ptr.vmem [resolvable:$true] %s2381
      %s2383 = sshll.u32 %s4, 4
      %s2384 = int_to_ptr.hbm [resolvable:$true] %s2383
      %2386 = dma.vmem_to_hbm [thread:$0]  %s2382, 16, %s2384, [#allocation3]
    $region21: #{tpu_custom_call.1} parent=1 // pred_fallthru
      _
    // Predicated region
    $region22: #{tpu_custom_call.1} parent=1 // pred_check
      _
    $region23: #{tpu_custom_call.1} parent=1 // pred_check_branch
      %2388 = sbr.rel (0) target = $region25
    $region24: #{tpu_custom_call.1} parent=1 // pred_region
      %2390 = dma.done [#allocation3], 16
    $region25: #{tpu_custom_call.1} parent=1 // pred_fallthru
      _
    %2391 = vsyncpa [#allocation3], 1

</llo_original>
